<compile_context>
chip_gen: v7x
topology: tpu7x:2x2x1
jax: 0.10.0
libtpu: 0.0.40
codegen_flags: <defaults>
</compile_context>

<pallas_src>
import functools

import jax
import jax.numpy as jnp
from jax import lax
from jax.experimental import pallas as pl
from jax.experimental.pallas import tpu as pltpu


def _silu(z):
    return z * jax.nn.sigmoid(z)


def _round_up(x, m):
    return (x + m - 1) // m * m


def _strip_vmem_bytes(TH, Wp, W, C1, C_):
    """Per-grid-step VMEM footprint (f32): double-buffered blocks + y scratch."""
    itm = 4
    xm = TH * Wp * C1 * itm           # main input strip block
    xh = 4 * Wp * C1 * itm            # bottom halo block
    out = TH * W * 2 * C_ * itm       # output block
    y_scr = (TH + 4) * Wp * C_ * itm  # cv1 output scratch (single-buffered)
    return 2 * (xm + xh + out) + y_scr


def _vmem_budget_bytes():
    try:
        cap = pltpu.get_tpu_info().vmem_capacity_bytes
    except Exception:
        cap = 64 * 1024 * 1024  # conservative (v7x-sized) fallback
    # <= 3/4 of physical keeps double-buffering + compiler scratch headroom.
    return int(min(cap * 3 // 4, 96 * 1024 * 1024))


def _pick_row_block(N, H, W, Wp, C1, C_, budget):
    """Largest multiple of 4 dividing H that fits the VMEM budget; prefer sizes
    that leave >= 2 total grid steps (v7x two-TensorCore load balance)."""
    fits = [t for t in range(4, H + 1, 4)
            if H % t == 0 and _strip_vmem_bytes(t, Wp, W, C1, C_) <= budget]
    if not fits:
        return None
    balanced = [t for t in fits if N * (H // t) >= 2]
    return max(balanced) if balanced else max(fits)


def _ghost_kernel(xm_ref, xh_ref, w1_ref, b1_ref, w2_ref, b2_ref, o_ref,
                  y_ref, *, W, TH, C_):
    # xm_ref: (TH, Wp, C1)  rows [h*TH,      h*TH+TH)   of the zero-padded input
    # xh_ref: (4,  Wp, C1)  rows [h*TH+TH,   h*TH+TH+4) (bottom halo)
    # y_ref : VMEM scratch (TH+4, Wp, C_) f32 -- zero-padded cv1 output strip
    # o_ref : (TH, W, 2*C_) -- [y, z] written via two channel-slice stores
    h = pl.program_id(1)
    TH4, Wp, _ = y_ref.shape
    C1 = xm_ref.shape[-1]

    # Static column mask for the 2-col zero border (left 2 + right Wp-W-2 cols).
    col = lax.broadcasted_iota(jnp.int32, (1, Wp, 1), 1)
    col_ok = (col >= 2) & (col < W + 2)

    # ---- cv1 (BN scale pre-folded into w1): two MXU dots straight into scratch ----
    b1 = b1_ref[...]
    ym = jnp.dot(xm_ref[...].reshape(TH * Wp, C1), w1_ref[...],
                 preferred_element_type=jnp.float32)
    ym = _silu(ym + b1).reshape(TH, Wp, C_)
    y_ref[0:TH] = jnp.where(col_ok, ym, 0.0)

    yh = jnp.dot(xh_ref[...].reshape(4 * Wp, C1), w1_ref[...],
                 preferred_element_type=jnp.float32)
    yh = _silu(yh + b1).reshape(4, Wp, C_)
    y_ref[TH:TH4] = jnp.where(col_ok, yh, 0.0)

    # Row zero-padding only exists on the first / last strip.
    @pl.when(h == 0)
    def _():
        y_ref[0:2] = jnp.zeros((2, Wp, C_), jnp.float32)

    @pl.when(h == pl.num_programs(1) - 1)
    def _():
        y_ref[TH + 2:TH4] = jnp.zeros((2, Wp, C_), jnp.float32)

    # ---- cv2: depthwise 5x5 (scale folded into w2) + bias + SiLU ----
    # Outer loop over dw: only 5 column (sublane) slices; row offsets are free
    # leading-dim picks on the already-loaded slab.
    w2 = w2_ref[...]                                         # (25, C_), hoisted
    acc = jnp.zeros((TH, W, C_), jnp.float32)
    for dw in range(5):
        colslab = y_ref[:, dw:dw + W, :]                     # (TH4, W, C_)
        for dh in range(5):
            acc = acc + colslab[dh:dh + TH] * w2[dh * 5 + dw].reshape(1, 1, C_)
    z = _silu(acc + b2_ref[...])

    # ---- output: two channel-slice stores (no lane-axis concat / relayout) ----
    o_ref[:, :, 0:C_] = y_ref[2:TH + 2, 2:W + 2, :].astype(o_ref.dtype)
    o_ref[:, :, C_:2 * C_] = z.astype(o_ref.dtype)


def ghost_conv(x_nchw, params, row_block=None):
    """GhostConv forward.  x_nchw: (N, C1, H, W) f32 -> (N, 2*C_, H, W) f32."""
    w1, s1, b1, w2, s2, b2 = params
    N, C1, H, W = x_nchw.shape
    C_ = w1.shape[1]

    Wp = _round_up(W + 4, 8)      # padded width; multiple of 8 keeps layout clean
    budget = _vmem_budget_bytes()
    TH = (row_block if row_block is not None
          else _pick_row_block(N, H, W, Wp, C1, C_, budget))
    if TH is None or H % TH != 0 or TH % 4 != 0:
        raise ValueError(f"row_block must divide H and be a multiple of 4; "
                         f"got H={H}, row_block={TH}")
    TH4 = TH + 4

    # Fold BN scales into the conv weights (free at wrapper time, saves two full
    # elementwise multiplies per strip in the kernel).
    w1f = (w1 * s1[None, :]).astype(jnp.float32)                   # (C1, C_)
    w2f = (w2 * s2[None, None, :]).reshape(25, C_).astype(jnp.float32)

    # NCHW -> NHWC + zero pad (2 rows top/bottom, 2 cols left, Wp-W-2 cols right).
    # TODO(synk): if the surrounding model runs NHWC, drop both transposes.
    x_nhwc = jnp.transpose(x_nchw, (0, 2, 3, 1))
    x_pad = jnp.pad(x_nhwc, ((0, 0), (2, 2), (2, Wp - W - 2), (0, 0)))

    kernel = functools.partial(_ghost_kernel, W=W, TH=TH, C_=C_)

    cost = pl.CostEstimate(
        flops=2 * N * H * W * C_ * (C1 + 25),
        transcendentals=2 * N * H * W * C_,
        bytes_accessed=4 * (x_pad.size + N * H * W * 2 * C_
                            + w1f.size + w2f.size + 2 * C_),
    )

    out_nhwc = pl.pallas_call(
        kernel,
        out_shape=jax.ShapeDtypeStruct((N, H, W, 2 * C_), x_nchw.dtype),
        grid=(N, H // TH),
        in_specs=[
            # main strip: rows [h*TH, h*TH + TH) of the padded input
            pl.BlockSpec((None, TH, Wp, C1), lambda n, h: (n, h, 0, 0)),
            # bottom halo: rows [h*TH + TH, h*TH + TH + 4)
            pl.BlockSpec((None, 4, Wp, C1),
                         lambda n, h: (n, (h + 1) * (TH // 4), 0, 0)),
            pl.BlockSpec((C1, C_), lambda n, h: (0, 0)),
            pl.BlockSpec((1, C_), lambda n, h: (0, 0)),
            pl.BlockSpec((25, C_), lambda n, h: (0, 0)),
            pl.BlockSpec((1, C_), lambda n, h: (0, 0)),
        ],
        out_specs=pl.BlockSpec((None, TH, W, 2 * C_), lambda n, h: (n, h, 0, 0)),
        scratch_shapes=[pltpu.VMEM((TH4, Wp, C_), jnp.float32)],
        compiler_params=pltpu.CompilerParams(
            dimension_semantics=("parallel", "parallel"),
            vmem_limit_bytes=budget),
        cost_estimate=cost,
    )(x_pad, x_pad, w1f, b1.reshape(1, C_), w2f, b2.reshape(1, C_))

    # back to NCHW for parity with the PyTorch module
    return jnp.transpose(out_nhwc, (0, 3, 1, 2))


def init_params(key, c1, c2):
    """Deterministic synthetic params; BN folded to (scale, bias) (eval mode)."""
    c_ = c2 // 2
    eps = 1e-5
    ks = jax.random.split(key, 10)
    # cv1: 1x1 conv weight (torch shape (c_, c1, 1, 1)) -> stored as (c1, c_)
    w1 = 0.1 * jax.random.normal(ks[0], (c1, c_), jnp.float32)
    g1 = jax.random.uniform(ks[1], (c_,), jnp.float32, 0.5, 1.5)
    be1 = 0.1 * jax.random.normal(ks[2], (c_,), jnp.float32)
    mu1 = 0.1 * jax.random.normal(ks[3], (c_,), jnp.float32)
    var1 = jax.random.uniform(ks[4], (c_,), jnp.float32, 0.5, 1.5)
    s1 = g1 / jnp.sqrt(var1 + eps)
    b1 = be1 - mu1 * s1
    # cv2: depthwise 5x5 weight (torch shape (c_, 1, 5, 5)) -> stored as (5, 5, c_)
    w2 = 0.1 * jax.random.normal(ks[5], (5, 5, c_), jnp.float32)
    g2 = jax.random.uniform(ks[6], (c_,), jnp.float32, 0.5, 1.5)
    be2 = 0.1 * jax.random.normal(ks[7], (c_,), jnp.float32)
    mu2 = 0.1 * jax.random.normal(ks[8], (c_,), jnp.float32)
    var2 = jax.random.uniform(ks[9], (c_,), jnp.float32, 0.5, 1.5)
    s2 = g2 / jnp.sqrt(var2 + eps)
    b2 = be2 - mu2 * s2
    return (w1, s1, b1, w2, s2, b2)


def ghost_conv_reference(x_nchw, params):
    """Pure-JAX reference for correctness checking (un-folded weights)."""
    w1, s1, b1, w2, s2, b2 = params
    c_ = w1.shape[1]
    x_nhwc = jnp.transpose(x_nchw, (0, 2, 3, 1))
    y = jnp.einsum('nhwc,cd->nhwd', x_nhwc, w1)
    y = _silu(y * s1 + b1)
    w2_hwio = w2.reshape(5, 5, 1, c_)
    z = lax.conv_general_dilated(
        y, w2_hwio, window_strides=(1, 1), padding=((2, 2), (2, 2)),
        dimension_numbers=('NHWC', 'HWIO', 'NHWC'), feature_group_count=c_)
    z = _silu(z * s2 + b2)
    out_nhwc = jnp.concatenate([y, z], axis=-1)
    return jnp.transpose(out_nhwc, (0, 3, 1, 2))


if __name__ == "__main__":
    key = jax.random.PRNGKey(0)
    kx, kp = jax.random.split(key)

    N, C1, H, W = 2, 4, 16, 16
    C2 = 8                                   # GhostConv(c1=4, c2=8) -> c_ = 4
    x = jax.random.normal(kx, (N, C1, H, W), jnp.float32)
    params = init_params(kp, C1, C2)

    ref = jax.block_until_ready(ghost_conv_reference(x, params))

    # row_block=8 -> 2 row-strips per image: exercises the halo-stitching path
    # and the pl.when-gated first/last-strip row zeroing separately.
    out = jax.block_until_ready(ghost_conv(x, params, row_block=8))
    assert out.shape == (N, C2, H, W), out.shape
    err = float(jnp.max(jnp.abs(out - ref)))
    assert jnp.allclose(out, ref, atol=1e-4, rtol=1e-4), err

    # Default (auto-picked) row block -> single strip per image: both row-pad
    # branches fire in the same grid step.
    out2 = jax.block_until_ready(ghost_conv(x, params))
    err2 = float(jnp.max(jnp.abs(out2 - ref)))
    assert jnp.allclose(out2, ref, atol=1e-4, rtol=1e-4), err2

    print("KERNEL_OK")
</pallas_src>

<mosaic_0001>
module attributes {stable_mosaic.version = 11 : i64} {
  func.func @_ghost_kernel(%arg0: i32, %arg1: i32, %arg2: memref<1x8x24x4xf32, #tpu.memory_space<vmem>>, %arg3: memref<1x4x24x4xf32, #tpu.memory_space<vmem>>, %arg4: memref<4x4xf32, #tpu.memory_space<vmem>>, %arg5: memref<1x4xf32, #tpu.memory_space<vmem>>, %arg6: memref<25x4xf32, #tpu.memory_space<vmem>>, %arg7: memref<1x4xf32, #tpu.memory_space<vmem>>, %arg8: memref<1x8x16x8xf32, #tpu.memory_space<vmem>>, %arg9: memref<12x24x4xf32, #tpu.memory_space<vmem>>) attributes {dimension_semantics = [#tpu.dimension_semantics<parallel>, #tpu.dimension_semantics<parallel>], iteration_bounds = array<i64: 2, 2>, scalar_prefetch = 0 : i64, scratch_operands = 1 : i64, tpu.core_type = #tpu.core_type<tc>, window_params = [{transform_indices = @transform_0, window_bounds = array<i64: 1, 8, 24, 4>}, {transform_indices = @transform_1, window_bounds = array<i64: 1, 4, 24, 4>}, {pipeline_mode = #tpu.pipeline_mode<synchronous>, transform_indices = @transform_2, window_bounds = array<i64: 4, 4>}, {pipeline_mode = #tpu.pipeline_mode<synchronous>, transform_indices = @transform_3, window_bounds = array<i64: 1, 4>}, {pipeline_mode = #tpu.pipeline_mode<synchronous>, transform_indices = @transform_4, window_bounds = array<i64: 25, 4>}, {pipeline_mode = #tpu.pipeline_mode<synchronous>, transform_indices = @transform_5, window_bounds = array<i64: 1, 4>}, {transform_indices = @transform_6, window_bounds = array<i64: 1, 8, 16, 8>}]} {
    %0 = tpu.iota {dimensions = array<i32: 1>} : vector<1x24x1xi32>
    %c2_i32 = arith.constant 2 : i32
    %1 = vector.broadcast %c2_i32 : i32 to vector<1x24x1xi32>
    %2 = arith.cmpi sge, %0, %1 : vector<1x24x1xi32>
    %c18_i32 = arith.constant 18 : i32
    %3 = vector.broadcast %c18_i32 : i32 to vector<1x24x1xi32>
    %4 = arith.cmpi slt, %0, %3 : vector<1x24x1xi32>
    %5 = arith.andi %2, %4 : vector<1x24x1xi1>
    %c0 = arith.constant 0 : index
    %c0_0 = arith.constant 0 : index
    %6 = vector.load %arg5[%c0, %c0_0] : memref<1x4xf32, #tpu.memory_space<vmem>>, vector<1x4xf32>
    %c0_1 = arith.constant 0 : index
    %c0_2 = arith.constant 0 : index
    %c0_3 = arith.constant 0 : index
    %c0_4 = arith.constant 0 : index
    %7 = vector.load %arg2[%c0_1, %c0_2, %c0_3, %c0_4] : memref<1x8x24x4xf32, #tpu.memory_space<vmem>>, vector<1x8x24x4xf32>
    %8 = vector.shape_cast %7 : vector<1x8x24x4xf32> to vector<8x24x4xf32>
    %9 = vector.shape_cast %8 : vector<8x24x4xf32> to vector<192x4xf32>
    %c0_5 = arith.constant 0 : index
    %c0_6 = arith.constant 0 : index
    %10 = vector.load %arg4[%c0_5, %c0_6] : memref<4x4xf32, #tpu.memory_space<vmem>>, vector<4x4xf32>
    %cst = arith.constant dense<0.000000e+00> : vector<192x4xf32>
    %11 = tpu.matmul %9, %10, %cst {dimension_numbers = #tpu.dot_dimension_numbers<[1], [0], [0], [1], [0, 0, 1, 1], [], []>} : vector<192x4xf32>, vector<4x4xf32>, vector<192x4xf32> -> vector<192x4xf32>
    %12 = vector.broadcast %6 : vector<1x4xf32> to vector<192x4xf32>
    %13 = arith.addf %11, %12 : vector<192x4xf32>
    %14 = arith.negf %13 : vector<192x4xf32>
    %15 = math.exp %14 : vector<192x4xf32>
    %cst_7 = arith.constant 1.000000e+00 : f32
    %16 = vector.broadcast %cst_7 : f32 to vector<192x4xf32>
    %17 = arith.addf %16, %15 : vector<192x4xf32>
    %18 = arith.divf %16, %17 : vector<192x4xf32>
    %19 = arith.mulf %13, %18 : vector<192x4xf32>
    %20 = vector.shape_cast %19 : vector<192x4xf32> to vector<8x24x4xf32>
    %cst_8 = arith.constant 0.000000e+00 : f32
    %21 = vector.shape_cast %5 : vector<1x24x1xi1> to vector<1x24x1xi1>
    %22 = vector.broadcast %21 : vector<1x24x1xi1> to vector<8x24x4xi1>
    %23 = vector.broadcast %cst_8 : f32 to vector<8x24x4xf32>
    %24 = arith.select %22, %20, %23 : vector<8x24x4xi1>, vector<8x24x4xf32>
    %c0_9 = arith.constant 0 : index
    %c0_10 = arith.constant 0 : index
    %c0_11 = arith.constant 0 : index
    %25 = vector.load %arg9[%c0_9, %c0_10, %c0_11] : memref<12x24x4xf32, #tpu.memory_space<vmem>>, vector<8x24x4xf32>
    tpu.vector_store %arg9[%c0_9, %c0_10, %c0_11], %24 {strides = array<i32>} : memref<12x24x4xf32, #tpu.memory_space<vmem>>, vector<8x24x4xf32>,
    %c0_12 = arith.constant 0 : index
    %c0_13 = arith.constant 0 : index
    %c0_14 = arith.constant 0 : index
    %c0_15 = arith.constant 0 : index
    %26 = vector.load %arg3[%c0_12, %c0_13, %c0_14, %c0_15] : memref<1x4x24x4xf32, #tpu.memory_space<vmem>>, vector<1x4x24x4xf32>
    %27 = vector.shape_cast %26 : vector<1x4x24x4xf32> to vector<4x24x4xf32>
    %28 = vector.shape_cast %27 : vector<4x24x4xf32> to vector<96x4xf32>
    %c0_16 = arith.constant 0 : index
    %c0_17 = arith.constant 0 : index
    %29 = vector.load %arg4[%c0_16, %c0_17] : memref<4x4xf32, #tpu.memory_space<vmem>>, vector<4x4xf32>
    %cst_18 = arith.constant dense<0.000000e+00> : vector<96x4xf32>
    %30 = tpu.matmul %28, %29, %cst_18 {dimension_numbers = #tpu.dot_dimension_numbers<[1], [0], [0], [1], [0, 0, 1, 1], [], []>} : vector<96x4xf32>, vector<4x4xf32>, vector<96x4xf32> -> vector<96x4xf32>
    %31 = vector.broadcast %6 : vector<1x4xf32> to vector<96x4xf32>
    %32 = arith.addf %30, %31 : vector<96x4xf32>
    %33 = arith.negf %32 : vector<96x4xf32>
    %34 = math.exp %33 : vector<96x4xf32>
    %cst_19 = arith.constant 1.000000e+00 : f32
    %35 = vector.broadcast %cst_19 : f32 to vector<96x4xf32>
    %36 = arith.addf %35, %34 : vector<96x4xf32>
    %37 = arith.divf %35, %36 : vector<96x4xf32>
    %38 = arith.mulf %32, %37 : vector<96x4xf32>
    %39 = vector.shape_cast %38 : vector<96x4xf32> to vector<4x24x4xf32>
    %cst_20 = arith.constant 0.000000e+00 : f32
    %40 = vector.shape_cast %5 : vector<1x24x1xi1> to vector<1x24x1xi1>
    %41 = vector.broadcast %40 : vector<1x24x1xi1> to vector<4x24x4xi1>
    %42 = vector.broadcast %cst_20 : f32 to vector<4x24x4xf32>
    %43 = arith.select %41, %39, %42 : vector<4x24x4xi1>, vector<4x24x4xf32>
    %c8 = arith.constant 8 : index
    %c0_21 = arith.constant 0 : index
    %c0_22 = arith.constant 0 : index
    %44 = vector.load %arg9[%c8, %c0_21, %c0_22] : memref<12x24x4xf32, #tpu.memory_space<vmem>>, vector<4x24x4xf32>
    tpu.vector_store %arg9[%c8, %c0_21, %c0_22], %43 {strides = array<i32>} : memref<12x24x4xf32, #tpu.memory_space<vmem>>, vector<4x24x4xf32>,
    %c0_i32 = arith.constant 0 : i32
    %45 = arith.cmpi eq, %arg1, %c0_i32 : i32
    %46 = arith.extui %45 : i1 to i32
    %c0_i32_23 = arith.constant 0 : i32
    %47 = arith.cmpi ne, %46, %c0_i32_23 : i32
    scf.if %47 {
      %cst_53 = arith.constant 0.000000e+00 : f32
      %250 = vector.broadcast %cst_53 : f32 to vector<2x24x4xf32>
      %c0_54 = arith.constant 0 : index
      %c0_55 = arith.constant 0 : index
      %c0_56 = arith.constant 0 : index
      %251 = vector.load %arg9[%c0_54, %c0_55, %c0_56] : memref<12x24x4xf32, #tpu.memory_space<vmem>>, vector<2x24x4xf32>
      tpu.vector_store %arg9[%c0_54, %c0_55, %c0_56], %250 {strides = array<i32>} : memref<12x24x4xf32, #tpu.memory_space<vmem>>, vector<2x24x4xf32>,
    } else {
    }
    %c1_i32 = arith.constant 1 : i32
    %48 = arith.cmpi eq, %arg1, %c1_i32 : i32
    %49 = arith.extui %48 : i1 to i32
    %c0_i32_24 = arith.constant 0 : i32
    %50 = arith.cmpi ne, %49, %c0_i32_24 : i32
    scf.if %50 {
      %cst_53 = arith.constant 0.000000e+00 : f32
      %250 = vector.broadcast %cst_53 : f32 to vector<2x24x4xf32>
      %c10 = arith.constant 10 : index
      %c0_54 = arith.constant 0 : index
      %c0_55 = arith.constant 0 : index
      %251 = vector.load %arg9[%c10, %c0_54, %c0_55] : memref<12x24x4xf32, #tpu.memory_space<vmem>>, vector<2x24x4xf32>
      tpu.vector_store %arg9[%c10, %c0_54, %c0_55], %250 {strides = array<i32>} : memref<12x24x4xf32, #tpu.memory_space<vmem>>, vector<2x24x4xf32>,
    } else {
    }
    %c0_25 = arith.constant 0 : index
    %c0_26 = arith.constant 0 : index
    %51 = vector.load %arg6[%c0_25, %c0_26] : memref<25x4xf32, #tpu.memory_space<vmem>>, vector<25x4xf32>
    %cst_27 = arith.constant 0.000000e+00 : f32
    %52 = vector.broadcast %cst_27 : f32 to vector<8x16x4xf32>
    %c0_28 = arith.constant 0 : index
    %c0_29 = arith.constant 0 : index
    %c0_30 = arith.constant 0 : index
    %53 = vector.load %arg9[%c0_28, %c0_29, %c0_30] : memref<12x24x4xf32, #tpu.memory_space<vmem>>, vector<12x16x4xf32>
    %54 = vector.extract_strided_slice %53 {offsets = [0, 0, 0], sizes = [8, 16, 4], strides = [1, 1, 1]} : vector<12x16x4xf32> to vector<8x16x4xf32>
    %55 = vector.extract_strided_slice %51 {offsets = [0, 0], sizes = [1, 4], strides = [1, 1]} : vector<25x4xf32> to vector<1x4xf32>
    %56 = vector.shape_cast %55 : vector<1x4xf32> to vector<4xf32>
    %57 = vector.shape_cast %56 : vector<4xf32> to vector<1x1x4xf32>
    %58 = vector.broadcast %57 : vector<1x1x4xf32> to vector<8x16x4xf32>
    %59 = arith.mulf %54, %58 : vector<8x16x4xf32>
    %60 = arith.addf %52, %59 : vector<8x16x4xf32>
    %61 = vector.extract_strided_slice %53 {offsets = [1, 0, 0], sizes = [8, 16, 4], strides = [1, 1, 1]} : vector<12x16x4xf32> to vector<8x16x4xf32>
    %62 = vector.extract_strided_slice %51 {offsets = [5, 0], sizes = [1, 4], strides = [1, 1]} : vector<25x4xf32> to vector<1x4xf32>
    %63 = vector.shape_cast %62 : vector<1x4xf32> to vector<4xf32>
    %64 = vector.shape_cast %63 : vector<4xf32> to vector<1x1x4xf32>
    %65 = vector.broadcast %64 : vector<1x1x4xf32> to vector<8x16x4xf32>
    %66 = arith.mulf %61, %65 : vector<8x16x4xf32>
    %67 = arith.addf %60, %66 : vector<8x16x4xf32>
    %68 = vector.extract_strided_slice %53 {offsets = [2, 0, 0], sizes = [8, 16, 4], strides = [1, 1, 1]} : vector<12x16x4xf32> to vector<8x16x4xf32>
    %69 = vector.extract_strided_slice %51 {offsets = [10, 0], sizes = [1, 4], strides = [1, 1]} : vector<25x4xf32> to vector<1x4xf32>
    %70 = vector.shape_cast %69 : vector<1x4xf32> to vector<4xf32>
    %71 = vector.shape_cast %70 : vector<4xf32> to vector<1x1x4xf32>
    %72 = vector.broadcast %71 : vector<1x1x4xf32> to vector<8x16x4xf32>
    %73 = arith.mulf %68, %72 : vector<8x16x4xf32>
    %74 = arith.addf %67, %73 : vector<8x16x4xf32>
    %75 = vector.extract_strided_slice %53 {offsets = [3, 0, 0], sizes = [8, 16, 4], strides = [1, 1, 1]} : vector<12x16x4xf32> to vector<8x16x4xf32>
    %76 = vector.extract_strided_slice %51 {offsets = [15, 0], sizes = [1, 4], strides = [1, 1]} : vector<25x4xf32> to vector<1x4xf32>
    %77 = vector.shape_cast %76 : vector<1x4xf32> to vector<4xf32>
    %78 = vector.shape_cast %77 : vector<4xf32> to vector<1x1x4xf32>
    %79 = vector.broadcast %78 : vector<1x1x4xf32> to vector<8x16x4xf32>
    %80 = arith.mulf %75, %79 : vector<8x16x4xf32>
    %81 = arith.addf %74, %80 : vector<8x16x4xf32>
    %82 = vector.extract_strided_slice %53 {offsets = [4, 0, 0], sizes = [8, 16, 4], strides = [1, 1, 1]} : vector<12x16x4xf32> to vector<8x16x4xf32>
    %83 = vector.extract_strided_slice %51 {offsets = [20, 0], sizes = [1, 4], strides = [1, 1]} : vector<25x4xf32> to vector<1x4xf32>
    %84 = vector.shape_cast %83 : vector<1x4xf32> to vector<4xf32>
    %85 = vector.shape_cast %84 : vector<4xf32> to vector<1x1x4xf32>
    %86 = vector.broadcast %85 : vector<1x1x4xf32> to vector<8x16x4xf32>
    %87 = arith.mulf %82, %86 : vector<8x16x4xf32>
    %88 = arith.addf %81, %87 : vector<8x16x4xf32>
    %c0_31 = arith.constant 0 : index
    %c1 = arith.constant 1 : index
    %c0_32 = arith.constant 0 : index
    %89 = vector.load %arg9[%c0_31, %c1, %c0_32] : memref<12x24x4xf32, #tpu.memory_space<vmem>>, vector<12x16x4xf32>
    %90 = vector.extract_strided_slice %89 {offsets = [0, 0, 0], sizes = [8, 16, 4], strides = [1, 1, 1]} : vector<12x16x4xf32> to vector<8x16x4xf32>
    %91 = vector.extract_strided_slice %51 {offsets = [1, 0], sizes = [1, 4], strides = [1, 1]} : vector<25x4xf32> to vector<1x4xf32>
    %92 = vector.shape_cast %91 : vector<1x4xf32> to vector<4xf32>
    %93 = vector.shape_cast %92 : vector<4xf32> to vector<1x1x4xf32>
    %94 = vector.broadcast %93 : vector<1x1x4xf32> to vector<8x16x4xf32>
    %95 = arith.mulf %90, %94 : vector<8x16x4xf32>
    %96 = arith.addf %88, %95 : vector<8x16x4xf32>
    %97 = vector.extract_strided_slice %89 {offsets = [1, 0, 0], sizes = [8, 16, 4], strides = [1, 1, 1]} : vector<12x16x4xf32> to vector<8x16x4xf32>
    %98 = vector.extract_strided_slice %51 {offsets = [6, 0], sizes = [1, 4], strides = [1, 1]} : vector<25x4xf32> to vector<1x4xf32>
    %99 = vector.shape_cast %98 : vector<1x4xf32> to vector<4xf32>
    %100 = vector.shape_cast %99 : vector<4xf32> to vector<1x1x4xf32>
    %101 = vector.broadcast %100 : vector<1x1x4xf32> to vector<8x16x4xf32>
    %102 = arith.mulf %97, %101 : vector<8x16x4xf32>
    %103 = arith.addf %96, %102 : vector<8x16x4xf32>
    %104 = vector.extract_strided_slice %89 {offsets = [2, 0, 0], sizes = [8, 16, 4], strides = [1, 1, 1]} : vector<12x16x4xf32> to vector<8x16x4xf32>
    %105 = vector.extract_strided_slice %51 {offsets = [11, 0], sizes = [1, 4], strides = [1, 1]} : vector<25x4xf32> to vector<1x4xf32>
    %106 = vector.shape_cast %105 : vector<1x4xf32> to vector<4xf32>
    %107 = vector.shape_cast %106 : vector<4xf32> to vector<1x1x4xf32>
    %108 = vector.broadcast %107 : vector<1x1x4xf32> to vector<8x16x4xf32>
    %109 = arith.mulf %104, %108 : vector<8x16x4xf32>
    %110 = arith.addf %103, %109 : vector<8x16x4xf32>
    %111 = vector.extract_strided_slice %89 {offsets = [3, 0, 0], sizes = [8, 16, 4], strides = [1, 1, 1]} : vector<12x16x4xf32> to vector<8x16x4xf32>
    %112 = vector.extract_strided_slice %51 {offsets = [16, 0], sizes = [1, 4], strides = [1, 1]} : vector<25x4xf32> to vector<1x4xf32>
    %113 = vector.shape_cast %112 : vector<1x4xf32> to vector<4xf32>
    %114 = vector.shape_cast %113 : vector<4xf32> to vector<1x1x4xf32>
    %115 = vector.broadcast %114 : vector<1x1x4xf32> to vector<8x16x4xf32>
    %116 = arith.mulf %111, %115 : vector<8x16x4xf32>
    %117 = arith.addf %110, %116 : vector<8x16x4xf32>
    %118 = vector.extract_strided_slice %89 {offsets = [4, 0, 0], sizes = [8, 16, 4], strides = [1, 1, 1]} : vector<12x16x4xf32> to vector<8x16x4xf32>
    %119 = vector.extract_strided_slice %51 {offsets = [21, 0], sizes = [1, 4], strides = [1, 1]} : vector<25x4xf32> to vector<1x4xf32>
    %120 = vector.shape_cast %119 : vector<1x4xf32> to vector<4xf32>
    %121 = vector.shape_cast %120 : vector<4xf32> to vector<1x1x4xf32>
    %122 = vector.broadcast %121 : vector<1x1x4xf32> to vector<8x16x4xf32>
    %123 = arith.mulf %118, %122 : vector<8x16x4xf32>
    %124 = arith.addf %117, %123 : vector<8x16x4xf32>
    %c0_33 = arith.constant 0 : index
    %c2 = arith.constant 2 : index
    %c0_34 = arith.constant 0 : index
    %125 = vector.load %arg9[%c0_33, %c2, %c0_34] : memref<12x24x4xf32, #tpu.memory_space<vmem>>, vector<12x16x4xf32>
    %126 = vector.extract_strided_slice %125 {offsets = [0, 0, 0], sizes = [8, 16, 4], strides = [1, 1, 1]} : vector<12x16x4xf32> to vector<8x16x4xf32>
    %127 = vector.extract_strided_slice %51 {offsets = [2, 0], sizes = [1, 4], strides = [1, 1]} : vector<25x4xf32> to vector<1x4xf32>
    %128 = vector.shape_cast %127 : vector<1x4xf32> to vector<4xf32>
    %129 = vector.shape_cast %128 : vector<4xf32> to vector<1x1x4xf32>
    %130 = vector.broadcast %129 : vector<1x1x4xf32> to vector<8x16x4xf32>
    %131 = arith.mulf %126, %130 : vector<8x16x4xf32>
    %132 = arith.addf %124, %131 : vector<8x16x4xf32>
    %133 = vector.extract_strided_slice %125 {offsets = [1, 0, 0], sizes = [8, 16, 4], strides = [1, 1, 1]} : vector<12x16x4xf32> to vector<8x16x4xf32>
    %134 = vector.extract_strided_slice %51 {offsets = [7, 0], sizes = [1, 4], strides = [1, 1]} : vector<25x4xf32> to vector<1x4xf32>
    %135 = vector.shape_cast %134 : vector<1x4xf32> to vector<4xf32>
    %136 = vector.shape_cast %135 : vector<4xf32> to vector<1x1x4xf32>
    %137 = vector.broadcast %136 : vector<1x1x4xf32> to vector<8x16x4xf32>
    %138 = arith.mulf %133, %137 : vector<8x16x4xf32>
    %139 = arith.addf %132, %138 : vector<8x16x4xf32>
    %140 = vector.extract_strided_slice %125 {offsets = [2, 0, 0], sizes = [8, 16, 4], strides = [1, 1, 1]} : vector<12x16x4xf32> to vector<8x16x4xf32>
    %141 = vector.extract_strided_slice %51 {offsets = [12, 0], sizes = [1, 4], strides = [1, 1]} : vector<25x4xf32> to vector<1x4xf32>
    %142 = vector.shape_cast %141 : vector<1x4xf32> to vector<4xf32>
    %143 = vector.shape_cast %142 : vector<4xf32> to vector<1x1x4xf32>
    %144 = vector.broadcast %143 : vector<1x1x4xf32> to vector<8x16x4xf32>
    %145 = arith.mulf %140, %144 : vector<8x16x4xf32>
    %146 = arith.addf %139, %145 : vector<8x16x4xf32>
    %147 = vector.extract_strided_slice %125 {offsets = [3, 0, 0], sizes = [8, 16, 4], strides = [1, 1, 1]} : vector<12x16x4xf32> to vector<8x16x4xf32>
    %148 = vector.extract_strided_slice %51 {offsets = [17, 0], sizes = [1, 4], strides = [1, 1]} : vector<25x4xf32> to vector<1x4xf32>
    %149 = vector.shape_cast %148 : vector<1x4xf32> to vector<4xf32>
    %150 = vector.shape_cast %149 : vector<4xf32> to vector<1x1x4xf32>
    %151 = vector.broadcast %150 : vector<1x1x4xf32> to vector<8x16x4xf32>
    %152 = arith.mulf %147, %151 : vector<8x16x4xf32>
    %153 = arith.addf %146, %152 : vector<8x16x4xf32>
    %154 = vector.extract_strided_slice %125 {offsets = [4, 0, 0], sizes = [8, 16, 4], strides = [1, 1, 1]} : vector<12x16x4xf32> to vector<8x16x4xf32>
    %155 = vector.extract_strided_slice %51 {offsets = [22, 0], sizes = [1, 4], strides = [1, 1]} : vector<25x4xf32> to vector<1x4xf32>
    %156 = vector.shape_cast %155 : vector<1x4xf32> to vector<4xf32>
    %157 = vector.shape_cast %156 : vector<4xf32> to vector<1x1x4xf32>
    %158 = vector.broadcast %157 : vector<1x1x4xf32> to vector<8x16x4xf32>
    %159 = arith.mulf %154, %158 : vector<8x16x4xf32>
    %160 = arith.addf %153, %159 : vector<8x16x4xf32>
    %c0_35 = arith.constant 0 : index
    %c3 = arith.constant 3 : index
    %c0_36 = arith.constant 0 : index
    %161 = vector.load %arg9[%c0_35, %c3, %c0_36] : memref<12x24x4xf32, #tpu.memory_space<vmem>>, vector<12x16x4xf32>
    %162 = vector.extract_strided_slice %161 {offsets = [0, 0, 0], sizes = [8, 16, 4], strides = [1, 1, 1]} : vector<12x16x4xf32> to vector<8x16x4xf32>
    %163 = vector.extract_strided_slice %51 {offsets = [3, 0], sizes = [1, 4], strides = [1, 1]} : vector<25x4xf32> to vector<1x4xf32>
    %164 = vector.shape_cast %163 : vector<1x4xf32> to vector<4xf32>
    %165 = vector.shape_cast %164 : vector<4xf32> to vector<1x1x4xf32>
    %166 = vector.broadcast %165 : vector<1x1x4xf32> to vector<8x16x4xf32>
    %167 = arith.mulf %162, %166 : vector<8x16x4xf32>
    %168 = arith.addf %160, %167 : vector<8x16x4xf32>
    %169 = vector.extract_strided_slice %161 {offsets = [1, 0, 0], sizes = [8, 16, 4], strides = [1, 1, 1]} : vector<12x16x4xf32> to vector<8x16x4xf32>
    %170 = vector.extract_strided_slice %51 {offsets = [8, 0], sizes = [1, 4], strides = [1, 1]} : vector<25x4xf32> to vector<1x4xf32>
    %171 = vector.shape_cast %170 : vector<1x4xf32> to vector<4xf32>
    %172 = vector.shape_cast %171 : vector<4xf32> to vector<1x1x4xf32>
    %173 = vector.broadcast %172 : vector<1x1x4xf32> to vector<8x16x4xf32>
    %174 = arith.mulf %169, %173 : vector<8x16x4xf32>
    %175 = arith.addf %168, %174 : vector<8x16x4xf32>
    %176 = vector.extract_strided_slice %161 {offsets = [2, 0, 0], sizes = [8, 16, 4], strides = [1, 1, 1]} : vector<12x16x4xf32> to vector<8x16x4xf32>
    %177 = vector.extract_strided_slice %51 {offsets = [13, 0], sizes = [1, 4], strides = [1, 1]} : vector<25x4xf32> to vector<1x4xf32>
    %178 = vector.shape_cast %177 : vector<1x4xf32> to vector<4xf32>
    %179 = vector.shape_cast %178 : vector<4xf32> to vector<1x1x4xf32>
    %180 = vector.broadcast %179 : vector<1x1x4xf32> to vector<8x16x4xf32>
    %181 = arith.mulf %176, %180 : vector<8x16x4xf32>
    %182 = arith.addf %175, %181 : vector<8x16x4xf32>
    %183 = vector.extract_strided_slice %161 {offsets = [3, 0, 0], sizes = [8, 16, 4], strides = [1, 1, 1]} : vector<12x16x4xf32> to vector<8x16x4xf32>
    %184 = vector.extract_strided_slice %51 {offsets = [18, 0], sizes = [1, 4], strides = [1, 1]} : vector<25x4xf32> to vector<1x4xf32>
    %185 = vector.shape_cast %184 : vector<1x4xf32> to vector<4xf32>
    %186 = vector.shape_cast %185 : vector<4xf32> to vector<1x1x4xf32>
    %187 = vector.broadcast %186 : vector<1x1x4xf32> to vector<8x16x4xf32>
    %188 = arith.mulf %183, %187 : vector<8x16x4xf32>
    %189 = arith.addf %182, %188 : vector<8x16x4xf32>
    %190 = vector.extract_strided_slice %161 {offsets = [4, 0, 0], sizes = [8, 16, 4], strides = [1, 1, 1]} : vector<12x16x4xf32> to vector<8x16x4xf32>
    %191 = vector.extract_strided_slice %51 {offsets = [23, 0], sizes = [1, 4], strides = [1, 1]} : vector<25x4xf32> to vector<1x4xf32>
    %192 = vector.shape_cast %191 : vector<1x4xf32> to vector<4xf32>
    %193 = vector.shape_cast %192 : vector<4xf32> to vector<1x1x4xf32>
    %194 = vector.broadcast %193 : vector<1x1x4xf32> to vector<8x16x4xf32>
    %195 = arith.mulf %190, %194 : vector<8x16x4xf32>
    %196 = arith.addf %189, %195 : vector<8x16x4xf32>
    %c0_37 = arith.constant 0 : index
    %c4 = arith.constant 4 : index
    %c0_38 = arith.constant 0 : index
    %197 = vector.load %arg9[%c0_37, %c4, %c0_38] : memref<12x24x4xf32, #tpu.memory_space<vmem>>, vector<12x16x4xf32>
    %198 = vector.extract_strided_slice %197 {offsets = [0, 0, 0], sizes = [8, 16, 4], strides = [1, 1, 1]} : vector<12x16x4xf32> to vector<8x16x4xf32>
    %199 = vector.extract_strided_slice %51 {offsets = [4, 0], sizes = [1, 4], strides = [1, 1]} : vector<25x4xf32> to vector<1x4xf32>
    %200 = vector.shape_cast %199 : vector<1x4xf32> to vector<4xf32>
    %201 = vector.shape_cast %200 : vector<4xf32> to vector<1x1x4xf32>
    %202 = vector.broadcast %201 : vector<1x1x4xf32> to vector<8x16x4xf32>
    %203 = arith.mulf %198, %202 : vector<8x16x4xf32>
    %204 = arith.addf %196, %203 : vector<8x16x4xf32>
    %205 = vector.extract_strided_slice %197 {offsets = [1, 0, 0], sizes = [8, 16, 4], strides = [1, 1, 1]} : vector<12x16x4xf32> to vector<8x16x4xf32>
    %206 = vector.extract_strided_slice %51 {offsets = [9, 0], sizes = [1, 4], strides = [1, 1]} : vector<25x4xf32> to vector<1x4xf32>
    %207 = vector.shape_cast %206 : vector<1x4xf32> to vector<4xf32>
    %208 = vector.shape_cast %207 : vector<4xf32> to vector<1x1x4xf32>
    %209 = vector.broadcast %208 : vector<1x1x4xf32> to vector<8x16x4xf32>
    %210 = arith.mulf %205, %209 : vector<8x16x4xf32>
    %211 = arith.addf %204, %210 : vector<8x16x4xf32>
    %212 = vector.extract_strided_slice %197 {offsets = [2, 0, 0], sizes = [8, 16, 4], strides = [1, 1, 1]} : vector<12x16x4xf32> to vector<8x16x4xf32>
    %213 = vector.extract_strided_slice %51 {offsets = [14, 0], sizes = [1, 4], strides = [1, 1]} : vector<25x4xf32> to vector<1x4xf32>
    %214 = vector.shape_cast %213 : vector<1x4xf32> to vector<4xf32>
    %215 = vector.shape_cast %214 : vector<4xf32> to vector<1x1x4xf32>
    %216 = vector.broadcast %215 : vector<1x1x4xf32> to vector<8x16x4xf32>
    %217 = arith.mulf %212, %216 : vector<8x16x4xf32>
    %218 = arith.addf %211, %217 : vector<8x16x4xf32>
    %219 = vector.extract_strided_slice %197 {offsets = [3, 0, 0], sizes = [8, 16, 4], strides = [1, 1, 1]} : vector<12x16x4xf32> to vector<8x16x4xf32>
    %220 = vector.extract_strided_slice %51 {offsets = [19, 0], sizes = [1, 4], strides = [1, 1]} : vector<25x4xf32> to vector<1x4xf32>
    %221 = vector.shape_cast %220 : vector<1x4xf32> to vector<4xf32>
    %222 = vector.shape_cast %221 : vector<4xf32> to vector<1x1x4xf32>
    %223 = vector.broadcast %222 : vector<1x1x4xf32> to vector<8x16x4xf32>
    %224 = arith.mulf %219, %223 : vector<8x16x4xf32>
    %225 = arith.addf %218, %224 : vector<8x16x4xf32>
    %226 = vector.extract_strided_slice %197 {offsets = [4, 0, 0], sizes = [8, 16, 4], strides = [1, 1, 1]} : vector<12x16x4xf32> to vector<8x16x4xf32>
    %227 = vector.extract_strided_slice %51 {offsets = [24, 0], sizes = [1, 4], strides = [1, 1]} : vector<25x4xf32> to vector<1x4xf32>
    %228 = vector.shape_cast %227 : vector<1x4xf32> to vector<4xf32>
    %229 = vector.shape_cast %228 : vector<4xf32> to vector<1x1x4xf32>
    %230 = vector.broadcast %229 : vector<1x1x4xf32> to vector<8x16x4xf32>
    %231 = arith.mulf %226, %230 : vector<8x16x4xf32>
    %232 = arith.addf %225, %231 : vector<8x16x4xf32>
    %c0_39 = arith.constant 0 : index
    %c0_40 = arith.constant 0 : index
    %233 = vector.load %arg7[%c0_39, %c0_40] : memref<1x4xf32, #tpu.memory_space<vmem>>, vector<1x4xf32>
    %234 = vector.shape_cast %233 : vector<1x4xf32> to vector<1x1x4xf32>
    %235 = vector.broadcast %234 : vector<1x1x4xf32> to vector<8x16x4xf32>
    %236 = arith.addf %232, %235 : vector<8x16x4xf32>
    %237 = arith.negf %236 : vector<8x16x4xf32>
    %238 = math.exp %237 : vector<8x16x4xf32>
    %cst_41 = arith.constant 1.000000e+00 : f32
    %239 = vector.broadcast %cst_41 : f32 to vector<8x16x4xf32>
    %240 = arith.addf %239, %238 : vector<8x16x4xf32>
    %241 = arith.divf %239, %240 : vector<8x16x4xf32>
    %242 = arith.mulf %236, %241 : vector<8x16x4xf32>
    %c2_42 = arith.constant 2 : index
    %c2_43 = arith.constant 2 : index
    %c0_44 = arith.constant 0 : index
    %243 = vector.load %arg9[%c2_42, %c2_43, %c0_44] : memref<12x24x4xf32, #tpu.memory_space<vmem>>, vector<8x16x4xf32>
    %c0_45 = arith.constant 0 : index
    %c0_46 = arith.constant 0 : index
    %c0_47 = arith.constant 0 : index
    %c0_48 = arith.constant 0 : index
    %244 = vector.load %arg8[%c0_45, %c0_46, %c0_47, %c0_48] : memref<1x8x16x8xf32, #tpu.memory_space<vmem>>, vector<1x8x16x4xf32>
    %245 = vector.shape_cast %244 : vector<1x8x16x4xf32> to vector<8x16x4xf32>
    %246 = vector.shape_cast %243 : vector<8x16x4xf32> to vector<1x8x16x4xf32>
    tpu.vector_store %arg8[%c0_45, %c0_46, %c0_47, %c0_48], %246 {strides = array<i32>} : memref<1x8x16x8xf32, #tpu.memory_space<vmem>>, vector<1x8x16x4xf32>,
    %c0_49 = arith.constant 0 : index
    %c0_50 = arith.constant 0 : index
    %c0_51 = arith.constant 0 : index
    %c4_52 = arith.constant 4 : index
    %247 = vector.load %arg8[%c0_49, %c0_50, %c0_51, %c4_52] : memref<1x8x16x8xf32, #tpu.memory_space<vmem>>, vector<1x8x16x4xf32>
    %248 = vector.shape_cast %247 : vector<1x8x16x4xf32> to vector<8x16x4xf32>
    %249 = vector.shape_cast %242 : vector<8x16x4xf32> to vector<1x8x16x4xf32>
    tpu.vector_store %arg8[%c0_49, %c0_50, %c0_51, %c4_52], %249 {strides = array<i32>} : memref<1x8x16x8xf32, #tpu.memory_space<vmem>>, vector<1x8x16x4xf32>,
    return
  }
  func.func @transform_0(%arg0: i32, %arg1: i32) -> (i32, i32, i32, i32) {
    %c0_i32 = arith.constant 0 : i32
    %c0_i32_0 = arith.constant 0 : i32
    %c0_i32_1 = arith.constant 0 : i32
    return %arg0, %arg1, %c0_i32, %c0_i32_0 : i32, i32, i32, i32
  }
  func.func @transform_1(%arg0: i32, %arg1: i32) -> (i32, i32, i32, i32) {
    %c1_i32 = arith.constant 1 : i32
    %0 = arith.addi %arg1, %c1_i32 : i32
    %c2_i32 = arith.constant 2 : i32
    %1 = arith.muli %0, %c2_i32 : i32
    %c0_i32 = arith.constant 0 : i32
    %c0_i32_0 = arith.constant 0 : i32
    %c0_i32_1 = arith.constant 0 : i32
    return %arg0, %1, %c0_i32, %c0_i32_0 : i32, i32, i32, i32
  }
  func.func @transform_2(%arg0: i32, %arg1: i32) -> (i32, i32) {
    %c0_i32 = arith.constant 0 : i32
    %c0_i32_0 = arith.constant 0 : i32
    %c0_i32_1 = arith.constant 0 : i32
    return %c0_i32, %c0_i32_0 : i32, i32
  }
  func.func @transform_3(%arg0: i32, %arg1: i32) -> (i32, i32) {
    %c0_i32 = arith.constant 0 : i32
    %c0_i32_0 = arith.constant 0 : i32
    %c0_i32_1 = arith.constant 0 : i32
    return %c0_i32, %c0_i32_0 : i32, i32
  }
  func.func @transform_4(%arg0: i32, %arg1: i32) -> (i32, i32) {
    %c0_i32 = arith.constant 0 : i32
    %c0_i32_0 = arith.constant 0 : i32
    %c0_i32_1 = arith.constant 0 : i32
    return %c0_i32, %c0_i32_0 : i32, i32
  }
  func.func @transform_5(%arg0: i32, %arg1: i32) -> (i32, i32) {
    %c0_i32 = arith.constant 0 : i32
    %c0_i32_0 = arith.constant 0 : i32
    %c0_i32_1 = arith.constant 0 : i32
    return %c0_i32, %c0_i32_0 : i32, i32
  }
  func.func @transform_6(%arg0: i32, %arg1: i32) -> (i32, i32, i32, i32) {
    %c0_i32 = arith.constant 0 : i32
    %c0_i32_0 = arith.constant 0 : i32
    %c0_i32_1 = arith.constant 0 : i32
    return %arg0, %arg1, %c0_i32, %c0_i32_0 : i32, i32, i32, i32
  }
}

</mosaic_0001>

<llo_original>
// kernel: tpu_custom_call.1
$region0: #{tpu_custom_call.1}
  #allocation0 [shape = 'u32[]', space=smem, size = 0x4, offset = 0x4, fixed_abs, tag = 'smem constant byte address 0x4 - core index']
  #allocation1 [shape = 'u32[144,128]{1,0:T(1,128)}', space=vmem, size = 0x12000, scoped, tag = 'internal scratch']
  #allocation2 [shape = 'f32[12,24,4]{2,1,0:T(8,128)}', space=vmem, size = 0x24000, scoped, tag = 'scratch operand']
  %s0 = inlined_call_operand.vmem [shape: f32[2,20,24,4], index: 0, kind: input, shape index: {}]
  %s1 = inlined_call_operand.vmem [shape: f32[2,20,24,4], index: 1, kind: input, shape index: {}]
  %s2 = inlined_call_operand.vmem [shape: f32[4,4], index: 2, kind: input, shape index: {}]
  %s3 = inlined_call_operand.vmem [shape: f32[1,4], index: 3, kind: input, shape index: {}]
  %s4 = inlined_call_operand.vmem [shape: f32[25,4], index: 4, kind: input, shape index: {}]
  %s5 = inlined_call_operand.vmem [shape: f32[1,4], index: 5, kind: input, shape index: {}]
  %s6 = inlined_call_operand.vmem [shape: f32[2,16,16,8], index: 6, kind: output, shape index: {}]
  %s7 = sld [smem:[#allocation0]]
  $region65: #{tpu_custom_call.1} parent=0
    _
  %s9 = ssub.s32 1, %s7
  %s10 = scalar_select 0, %s9, %s7
  loop: start=0, step=1, limit=6
  $region2: #{tpu_custom_call.1} parent=0 // loop_pre_header
    _
  $region3: #{tpu_custom_call.1} parent=0 // loop_header
    %s12 = sphi 0, %s16
    %p13 = scmp.ge.s32.totalorder %s12, 6
    %s19 = sphi 0, %s31
    %s20 = sphi 0, %s27
    %s21 = sphi 0, %s19
    %s22 = sphi 0, %s20
    %s23 = sphi 0, %s21
    %s24 = sphi 0, %s22
    %s36 = sphi 0, %s38
    %s39 = sphi 0, %s36
    %s40 = sphi 0, %s39
    %s56 = sphi 0, %s40
    %s68 = sphi 0, %s70
    %s71 = sphi 0, %s68
    %s72 = sphi 0, %s71
    %s88 = sphi 0, %s72
    %s92 = sphi 0, %s92
    %s94 = sphi 0, %s92
    %s95 = sphi 0, %s94
    %s109 = sphi 0, %s95
    %s113 = sphi 0, %s113
    %s115 = sphi 0, %s113
    %s116 = sphi 0, %s115
    %s130 = sphi 0, %s116
    %s134 = sphi 0, %s134
    %s136 = sphi 0, %s134
    %s137 = sphi 0, %s136
    %s151 = sphi 0, %s137
    %s155 = sphi 0, %s155
    %s157 = sphi 0, %s155
    %s158 = sphi 0, %s157
    %s172 = sphi 0, %s158
    %s180 = sphi 0, %s182
    %s183 = sphi 0, %s180
    %s184 = sphi 0, %s183
    %s200 = sphi 0, %s184
  $region4: #{tpu_custom_call.1} parent=0 // loop_header_branch
    %15 = sbr.rel (%p13) target = $region8
  $region5: #{tpu_custom_call.1} parent=0 // loop_body
    %s17 = ssub.s32 %s12, 1
    %s18 = ssub.s32 %s12, 2
    %s25 = sadd.s32 1, %s20
    %p26 = scmp.ge.s32.totalorder %s25, 2
    %s27 = scalar_select %p26, 0, %s25
    %s28 = sadd.s32 1, %s19
    %s29 = scalar_select %p26, %s28, %s19
    %p30 = scmp.ge.s32.totalorder %s29, 2
    %s31 = scalar_select %p30, 0, %s29
    %s32 = ssub.s32 %s19, %s31
    %s33 = ssub.s32 %s20, %s27
    %s34 = sor.u32 %s32, %s33
    %p35 = scmp.eq.s32.totalorder %s34, 0
    %s37 = sadd.s32 %s36, 1
    %s38 = scalar_select %p35, %s36, %s37
    %p41 = pneg %p35
    %p42 = scmp.eq.s32.totalorder %s12, 3
    %p43 = por %p41, %p42
    %p44 = scmp.ne.s32.totalorder %s36, %s39
    %p45 = scmp.eq.s32.totalorder %s12, 0
    %p46 = por %p44, %p45
    %p47 = scmp.ne.s32.totalorder %s36, %s39
    %p48 = scmp.eq.s32.totalorder %s17, 3
    %p49 = por %p47, %p48
    %p50 = scmp.ne.s32.totalorder %s39, %s40
    %p51 = scmp.eq.s32.totalorder %s17, 0
    %p52 = por %p50, %p51
    %p53 = scmp.ne.s32.totalorder %s39, %s40
    %p54 = scmp.eq.s32.totalorder %s18, 3
    %p55 = por %p53, %p54
    %p57 = scmp.ne.s32.totalorder %s40, %s56
    %p58 = scmp.eq.s32.totalorder %s18, 0
    %p59 = por %p57, %p58
    %s60 = sadd.s32 %s20, 1
    %s61 = smul.u32 %s60, 2
    %s62 = sadd.s32 %s27, 1
    %s63 = smul.u32 %s62, 2
    %s64 = ssub.s32 %s19, %s31
    %s65 = ssub.s32 %s61, %s63
    %s66 = sor.u32 %s64, %s65
    %p67 = scmp.eq.s32.totalorder %s66, 0
    %s69 = sadd.s32 %s68, 1
    %s70 = scalar_select %p67, %s68, %s69
    %p73 = pneg %p67
    %p74 = scmp.eq.s32.totalorder %s12, 3
    %p75 = por %p73, %p74
    %p76 = scmp.ne.s32.totalorder %s68, %s71
    %p77 = scmp.eq.s32.totalorder %s12, 0
    %p78 = por %p76, %p77
    %p79 = scmp.ne.s32.totalorder %s68, %s71
    %p80 = scmp.eq.s32.totalorder %s17, 3
    %p81 = por %p79, %p80
    %p82 = scmp.ne.s32.totalorder %s71, %s72
    %p83 = scmp.eq.s32.totalorder %s17, 0
    %p84 = por %p82, %p83
    %p85 = scmp.ne.s32.totalorder %s71, %s72
    %p86 = scmp.eq.s32.totalorder %s18, 3
    %p87 = por %p85, %p86
    %p89 = scmp.ne.s32.totalorder %s72, %s88
    %p90 = scmp.eq.s32.totalorder %s18, 0
    %p91 = por %p89, %p90
    %s93 = sadd.s32 %s92, 1
    %p96 = scmp.eq.s32.totalorder %s12, 3
    %p97 = scmp.ne.s32.totalorder %s92, %s94
    %p98 = scmp.eq.s32.totalorder %s12, 0
    %p99 = por %p97, %p98
    %p100 = scmp.ne.s32.totalorder %s92, %s94
    %p101 = scmp.eq.s32.totalorder %s17, 3
    %p102 = por %p100, %p101
    %p103 = scmp.ne.s32.totalorder %s94, %s95
    %p104 = scmp.eq.s32.totalorder %s17, 0
    %p105 = por %p103, %p104
    %p106 = scmp.ne.s32.totalorder %s94, %s95
    %p107 = scmp.eq.s32.totalorder %s18, 3
    %p108 = por %p106, %p107
    %p110 = scmp.ne.s32.totalorder %s95, %s109
    %p111 = scmp.eq.s32.totalorder %s18, 0
    %p112 = por %p110, %p111
    %s114 = sadd.s32 %s113, 1
    %p117 = scmp.eq.s32.totalorder %s12, 3
    %p118 = scmp.ne.s32.totalorder %s113, %s115
    %p119 = scmp.eq.s32.totalorder %s12, 0
    %p120 = por %p118, %p119
    %p121 = scmp.ne.s32.totalorder %s113, %s115
    %p122 = scmp.eq.s32.totalorder %s17, 3
    %p123 = por %p121, %p122
    %p124 = scmp.ne.s32.totalorder %s115, %s116
    %p125 = scmp.eq.s32.totalorder %s17, 0
    %p126 = por %p124, %p125
    %p127 = scmp.ne.s32.totalorder %s115, %s116
    %p128 = scmp.eq.s32.totalorder %s18, 3
    %p129 = por %p127, %p128
    %p131 = scmp.ne.s32.totalorder %s116, %s130
    %p132 = scmp.eq.s32.totalorder %s18, 0
    %p133 = por %p131, %p132
    %s135 = sadd.s32 %s134, 1
    %p138 = scmp.eq.s32.totalorder %s12, 3
    %p139 = scmp.ne.s32.totalorder %s134, %s136
    %p140 = scmp.eq.s32.totalorder %s12, 0
    %p141 = por %p139, %p140
    %p142 = scmp.ne.s32.totalorder %s134, %s136
    %p143 = scmp.eq.s32.totalorder %s17, 3
    %p144 = por %p142, %p143
    %p145 = scmp.ne.s32.totalorder %s136, %s137
    %p146 = scmp.eq.s32.totalorder %s17, 0
    %p147 = por %p145, %p146
    %p148 = scmp.ne.s32.totalorder %s136, %s137
    %p149 = scmp.eq.s32.totalorder %s18, 3
    %p150 = por %p148, %p149
    %p152 = scmp.ne.s32.totalorder %s137, %s151
    %p153 = scmp.eq.s32.totalorder %s18, 0
    %p154 = por %p152, %p153
    %s156 = sadd.s32 %s155, 1
    %p159 = scmp.eq.s32.totalorder %s12, 3
    %p160 = scmp.ne.s32.totalorder %s155, %s157
    %p161 = scmp.eq.s32.totalorder %s12, 0
    %p162 = por %p160, %p161
    %p163 = scmp.ne.s32.totalorder %s155, %s157
    %p164 = scmp.eq.s32.totalorder %s17, 3
    %p165 = por %p163, %p164
    %p166 = scmp.ne.s32.totalorder %s157, %s158
    %p167 = scmp.eq.s32.totalorder %s17, 0
    %p168 = por %p166, %p167
    %p169 = scmp.ne.s32.totalorder %s157, %s158
    %p170 = scmp.eq.s32.totalorder %s18, 3
    %p171 = por %p169, %p170
    %p173 = scmp.ne.s32.totalorder %s158, %s172
    %p174 = scmp.eq.s32.totalorder %s18, 0
    %p175 = por %p173, %p174
    %s176 = ssub.s32 %s19, %s31
    %s177 = ssub.s32 %s20, %s27
    %s178 = sor.u32 %s176, %s177
    %p179 = scmp.eq.s32.totalorder %s178, 0
    %s181 = sadd.s32 %s180, 1
    %s182 = scalar_select %p179, %s180, %s181
    %p185 = pneg %p179
    %p186 = scmp.eq.s32.totalorder %s12, 3
    %p187 = por %p185, %p186
    %p188 = scmp.ne.s32.totalorder %s180, %s183
    %p189 = scmp.eq.s32.totalorder %s12, 0
    %p190 = por %p188, %p189
    %p191 = scmp.ne.s32.totalorder %s180, %s183
    %p192 = scmp.eq.s32.totalorder %s17, 3
    %p193 = por %p191, %p192
    %p194 = scmp.ne.s32.totalorder %s183, %s184
    %p195 = scmp.eq.s32.totalorder %s17, 0
    %p196 = por %p194, %p195
    %p197 = scmp.ne.s32.totalorder %s183, %s184
    %p198 = scmp.eq.s32.totalorder %s18, 3
    %p199 = por %p197, %p198
    %p201 = scmp.ne.s32.totalorder %s184, %s200
    %p202 = scmp.eq.s32.totalorder %s18, 0
    %p203 = por %p201, %p202
    %p204 = scmp.le.s32.totalorder 1, %s12
    %p205 = scmp.lt.s32.totalorder %s12, 5
    %p206 = pnand %p204, %p205
    %p207 = pneg %p206
    // Predicated region
    $region9: #{tpu_custom_call.1} parent=5 // pred_check
      _
    $region10: #{tpu_custom_call.1} parent=5 // pred_check_branch
      %209 = sbr.rel (%p206) target = $region12
    $region11: #{tpu_custom_call.1} parent=5 // pred_region
      %s210 = ssub.s32 %s12, 1
      // Predicated region
      $region13: #{tpu_custom_call.1} parent=11 // pred_check
        %p211 = pneg %p105
      $region14: #{tpu_custom_call.1} parent=11 // pred_check_branch
        %213 = sbr.rel (%p211) target = $region16
      $region15: #{tpu_custom_call.1} parent=11 // pred_region
        _
      $region16: #{tpu_custom_call.1} parent=11 // pred_fallthru
        _
      // Predicated region
      $region17: #{tpu_custom_call.1} parent=11 // pred_check
        %p214 = pneg %p126
      $region18: #{tpu_custom_call.1} parent=11 // pred_check_branch
        %216 = sbr.rel (%p214) target = $region20
      $region19: #{tpu_custom_call.1} parent=11 // pred_region
        _
      $region20: #{tpu_custom_call.1} parent=11 // pred_fallthru
        _
      // Predicated region
      $region21: #{tpu_custom_call.1} parent=11 // pred_check
        %p217 = pneg %p147
      $region22: #{tpu_custom_call.1} parent=11 // pred_check_branch
        %219 = sbr.rel (%p217) target = $region24
      $region23: #{tpu_custom_call.1} parent=11 // pred_region
        _
      $region24: #{tpu_custom_call.1} parent=11 // pred_fallthru
        _
      // Predicated region
      $region25: #{tpu_custom_call.1} parent=11 // pred_check
        %p220 = pneg %p168
      $region26: #{tpu_custom_call.1} parent=11 // pred_check_branch
        %222 = sbr.rel (%p220) target = $region28
      $region27: #{tpu_custom_call.1} parent=11 // pred_region
        _
      $region28: #{tpu_custom_call.1} parent=11 // pred_fallthru
        _
    $region12: #{tpu_custom_call.1} parent=5 // pred_fallthru
      _
    %p223 = scmp.lt.s32.totalorder %s12, 4
    // Predicated region
    $region29: #{tpu_custom_call.1} parent=5 // pred_check
      %p224 = pneg %p223
    $region30: #{tpu_custom_call.1} parent=5 // pred_check_branch
      %226 = sbr.rel (%p224) target = $region32
    $region31: #{tpu_custom_call.1} parent=5 // pred_region
      // Predicated region
      $region33: #{tpu_custom_call.1} parent=31 // pred_check
        %p227 = pneg %p46
      $region34: #{tpu_custom_call.1} parent=31 // pred_check_branch
        %229 = sbr.rel (%p227) target = $region36
      $region35: #{tpu_custom_call.1} parent=31 // pred_region
        %s230 = smul.u32 8, %s20
        %s231 = ssub.s32 20, %s230
        %p232 = scmp.lt.s32.totalorder %s231, 8
        %s233 = scalar_select %p232, %s231, 8
        %s234 = smul.u32 128, %s233
        %s235 = smul.u32 %s234, 3
        %p236 = scmp.lt.s32.totalorder %s19, 1
        %s237 = scalar_select %p236, %s19, 1
        %p238 = scmp.lt.s32.totalorder %s230, 19
        %s239 = scalar_select %p238, %s230, 19
        %s240 = smul.addr %s239, 3
        %s241 = smul.addr %s237, 60
        %s242 = sadd.s32 %s240, %s241
        %s243 = smul.addr %s242, 8
        %s244 = scalar_lea.vmem %s0, %s243
        %s245 = smul.u32 8, %s20
        %s246 = ssub.s32 20, %s245
        %p247 = scmp.lt.s32.totalorder %s246, 8
        %s248 = scalar_select %p247, %s246, 8
        %s249 = smul.u32 128, %s248
        %s250 = smul.u32 %s249, 3
      $region36: #{tpu_custom_call.1} parent=31 // pred_fallthru
        _
      // Predicated region
      $region37: #{tpu_custom_call.1} parent=31 // pred_check
        %p251 = pneg %p78
      $region38: #{tpu_custom_call.1} parent=31 // pred_check_branch
        %253 = sbr.rel (%p251) target = $region40
      $region39: #{tpu_custom_call.1} parent=31 // pred_region
        %s254 = sadd.s32 %s20, 1
        %s255 = smul.u32 %s254, 2
        %s256 = smul.u32 4, %s255
        %p257 = scmp.lt.s32.totalorder %s19, 1
        %s258 = scalar_select %p257, %s19, 1
        %p259 = scmp.lt.s32.totalorder %s256, 19
        %s260 = scalar_select %p259, %s256, 19
        %s261 = smul.addr %s260, 3
        %s262 = smul.addr %s258, 60
        %s263 = sadd.s32 %s261, %s262
        %s264 = smul.addr %s263, 8
        %s265 = scalar_lea.vmem %s1, %s264
        %s266 = sadd.s32 %s20, 1
        %s267 = smul.u32 %s266, 2
        %s268 = smul.u32 4, %s267
      $region40: #{tpu_custom_call.1} parent=31 // pred_fallthru
        _
    $region32: #{tpu_custom_call.1} parent=5 // pred_fallthru
      _
    %p269 = scmp.le.s32.totalorder 1, %s12
    %p270 = scmp.lt.s32.totalorder %s12, 5
    %p271 = pnand %p269, %p270
    %p272 = pneg %p271
    // Predicated region
    $region41: #{tpu_custom_call.1} parent=5 // pred_check
      _
    $region42: #{tpu_custom_call.1} parent=5 // pred_check_branch
      %274 = sbr.rel (%p271) target = $region44
    $region43: #{tpu_custom_call.1} parent=5 // pred_region
      %s275 = ssub.s32 %s12, 1
      %s276 = smul.u32 8, %s22
      %s277 = ssub.s32 20, %s276
      %p278 = scmp.lt.s32.totalorder %s277, 8
      %s279 = scalar_select %p278, %s277, 8
      %s280 = smul.u32 128, %s279
      %s281 = smul.u32 %s280, 3
      %p282 = scmp.lt.s32.totalorder %s21, 1
      %s283 = scalar_select %p282, %s21, 1
      %p284 = scmp.lt.s32.totalorder %s276, 19
      %s285 = scalar_select %p284, %s276, 19
      %s286 = smul.addr %s285, 3
      %s287 = smul.addr %s283, 60
      %s288 = sadd.s32 %s286, %s287
      %s289 = smul.addr %s288, 8
      %s290 = scalar_lea.vmem %s0, %s289
      %p291 = pneg %p52
      %p292 = pneg %p49
      %s293 = sadd.s32 %s22, 1
      %s294 = smul.u32 %s293, 2
      %s295 = smul.u32 4, %s294
      %p296 = scmp.lt.s32.totalorder %s21, 1
      %s297 = scalar_select %p296, %s21, 1
      %p298 = scmp.lt.s32.totalorder %s295, 19
      %s299 = scalar_select %p298, %s295, 19
      %s300 = smul.addr %s299, 3
      %s301 = smul.addr %s297, 60
      %s302 = sadd.s32 %s300, %s301
      %s303 = smul.addr %s302, 8
      %s304 = scalar_lea.vmem %s1, %s303
      %p305 = pneg %p84
      %p306 = pneg %p81
      %p307 = pneg %p105
      %p308 = pneg %p102
      %p309 = pneg %p126
      %p310 = pneg %p123
      %p311 = pneg %p147
      %p312 = pneg %p144
      %p313 = pneg %p168
      %p314 = pneg %p165
      %p315 = pneg %p196
      %p316 = pneg %p193
      %s317 = smul.u32 8, %s22
      %p318 = scmp.lt.s32.totalorder %s21, 1
      %s319 = scalar_select %p318, %s21, 1
      %p320 = scmp.lt.s32.totalorder %s317, 15
      %s321 = scalar_select %p320, %s317, 15
      %s322 = smul.addr %s321, 2
      %s323 = smul.addr %s319, 32
      %s324 = sadd.s32 %s322, %s323
      %s325 = smul.addr %s324, 8
      %s326 = scalar_lea.vmem %s6, %s325
      %s327 = smul.u32 8, %s22
      %s328 = ssub.s32 20, %s327
      %p329 = scmp.lt.s32.totalorder %s328, 8
      %s330 = scalar_select %p329, %s328, 8
      %s331 = smul.u32 128, %s330
      %s332 = smul.u32 %s331, 3
      %p333 = scmp.lt.s32.totalorder %s21, 1
      %s334 = scalar_select %p333, %s21, 1
      %p335 = scmp.lt.s32.totalorder %s327, 19
      %s336 = scalar_select %p335, %s327, 19
      %s337 = smul.addr %s336, 3
      %s338 = smul.addr %s334, 60
      %s339 = sadd.s32 %s337, %s338
      %s340 = smul.addr %s339, 8
      %s341 = scalar_lea.vmem %s0, %s340
      %s342 = smul.u32 8, %s22
      %s343 = ssub.s32 20, %s342
      %p344 = scmp.lt.s32.totalorder %s343, 8
      %s345 = scalar_select %p344, %s343, 8
      %s346 = smul.u32 128, %s345
      %s347 = smul.u32 %s346, 3
      %s348 = sadd.s32 %s22, 1
      %s349 = smul.u32 %s348, 2
      %s350 = smul.u32 4, %s349
      %p351 = scmp.lt.s32.totalorder %s21, 1
      %s352 = scalar_select %p351, %s21, 1
      %p353 = scmp.lt.s32.totalorder %s350, 19
      %s354 = scalar_select %p353, %s350, 19
      %s355 = smul.addr %s354, 3
      %s356 = smul.addr %s352, 60
      %s357 = sadd.s32 %s355, %s356
      %s358 = smul.addr %s357, 8
      %s359 = scalar_lea.vmem %s1, %s358
      %s360 = sadd.s32 %s22, 1
      %s361 = smul.u32 %s360, 2
      %s362 = smul.u32 4, %s361
      %s363 = smul.u32 8, %s22
      %p364 = scmp.lt.s32.totalorder %s21, 1
      %s365 = scalar_select %p364, %s21, 1
      %p366 = scmp.lt.s32.totalorder %s363, 15
      %s367 = scalar_select %p366, %s363, 15
      %s368 = smul.addr %s367, 2
      %s369 = smul.addr %s365, 32
      %s370 = sadd.s32 %s368, %s369
      %s371 = smul.addr %s370, 8
      %s372 = scalar_lea.vmem %s6, %s371
      %s373 = smul.u32 8, %s22
      %v374 = vlaneseq
      %v375 = vshrl.u32 %v374, 7
      %v376 = vadd.s32 %v375, 8
      %v377 = vadd.s32 %v375, 16
      %vm378 = vcmp.ge.s32.totalorder %v375, 2
      %vm379 = vcmp.ge.s32.totalorder %v376, 2
      %vm380 = vcmp.ge.s32.totalorder %v377, 2
      %vm381 = vcmp.lt.s32.totalorder %v375, 18
      %vm382 = vcmp.lt.s32.totalorder %v376, 18
      %vm383 = vcmp.lt.s32.totalorder %v377, 18
      %vm384 = vmand %vm378, %vm381
      %vm385 = vmand %vm379, %vm382
      %vm386 = vmand %vm380, %vm383
      %v387 = vld [vmem:[%s3] sm:$0x1]
      %v388 = vld [vmem:[%s341] sm:$0xff]
      %v389 = vld [vmem:[%s341 + $0x8] sm:$0xff]
      %v390 = vld [vmem:[%s341 + $0x10] sm:$0xff]
      %v391 = vld [vmem:[%s341 + $0x18] sm:$0xff]
      %v392 = vld [vmem:[%s341 + $0x20] sm:$0xff]
      %v393 = vld [vmem:[%s341 + $0x28] sm:$0xff]
      %v394 = vld [vmem:[%s341 + $0x30] sm:$0xff]
      %v395 = vld [vmem:[%s341 + $0x38] sm:$0xff]
      %v396 = vld [vmem:[%s341 + $0x40] sm:$0xff]
      %v397 = vld [vmem:[%s341 + $0x48] sm:$0xff]
      %v398 = vld [vmem:[%s341 + $0x50] sm:$0xff]
      %v399 = vld [vmem:[%s341 + $0x58] sm:$0xff]
      %v400 = vld [vmem:[%s341 + $0x60] sm:$0xff]
      %v401 = vld [vmem:[%s341 + $0x68] sm:$0xff]
      %v402 = vld [vmem:[%s341 + $0x70] sm:$0xff]
      %v403 = vld [vmem:[%s341 + $0x78] sm:$0xff]
      %v404 = vld [vmem:[%s341 + $0x80] sm:$0xff]
      %v405 = vld [vmem:[%s341 + $0x88] sm:$0xff]
      %v406 = vld [vmem:[%s341 + $0x90] sm:$0xff]
      %v407 = vld [vmem:[%s341 + $0x98] sm:$0xff]
      %v408 = vld [vmem:[%s341 + $0xa0] sm:$0xff]
      %v409 = vld [vmem:[%s341 + $0xa8] sm:$0xff]
      %v410 = vld [vmem:[%s341 + $0xb0] sm:$0xff]
      %v411 = vld [vmem:[%s341 + $0xb8] sm:$0xff]
      %v412 = vld [vmem:[%s2] sm:$0xf]
      %v414 = vlaneseq
      %v415 = vshrl.u32 %v414, 7
      %v416 = vsub.s32 0, %v415
      %v417 = vrot.slane %v387, %v416
      %vm419 = vcmask 31744
      %v421 = vsel %vm419, %v388, 0
      %v424 = vsel %vm419, %v389, 0
      %v427 = vsel %vm419, %v390, 0
      %v430 = vsel %vm419, %v391, 0
      %v433 = vsel %vm419, %v392, 0
      %v436 = vsel %vm419, %v393, 0
      %v439 = vsel %vm419, %v394, 0
      %v442 = vsel %vm419, %v395, 0
      %v445 = vsel %vm419, %v396, 0
      %v448 = vsel %vm419, %v397, 0
      %v451 = vsel %vm419, %v398, 0
      %v454 = vsel %vm419, %v399, 0
      %v457 = vsel %vm419, %v400, 0
      %v460 = vsel %vm419, %v401, 0
      %v463 = vsel %vm419, %v402, 0
      %v466 = vsel %vm419, %v403, 0
      %v469 = vsel %vm419, %v404, 0
      %v472 = vsel %vm419, %v405, 0
      %v475 = vsel %vm419, %v406, 0
      %v478 = vsel %vm419, %v407, 0
      %v481 = vsel %vm419, %v408, 0
      %v484 = vsel %vm419, %v409, 0
      %v487 = vsel %vm419, %v410, 0
      %v490 = vsel %vm419, %v411, 0
      %vm492 = vcmask 1043456
      %v494 = vsel %vm492, %v412, 0
      %496 = vmatprep.subr.mxu0 0.0
      %497 = vmatpush1.msra.mxu0 %v494
      %498 = vmatprep.subr.mxu0 0.0
      %499 = vmatpush1.msra.mxu0 0.0
      %500 = vmatprep.subr.mxu0 0.0
      %501 = vmatpush1.msra.mxu0 0.0
      %502 = vmatprep.subr.mxu0 0.0
      %503 = vmatpush1.msra.mxu0 0.0
      %504 = vmatprep.subr.mxu0 0.0
      %505 = vmatpush1.msra.mxu0 0.0
      %506 = vmatprep.subr.mxu0 0.0
      %507 = vmatpush1.msra.mxu0 0.0
      %508 = vmatprep.subr.mxu0 0.0
      %509 = vmatpush1.msra.mxu0 0.0
      %510 = vmatprep.subr.mxu0 0.0
      %511 = vmatpush1.msra.mxu0 0.0
      %512 = vmatprep.subr.mxu0 0.0
      %513 = vmatpush1.msra.mxu0 0.0
      %514 = vmatprep.subr.mxu0 0.0
      %515 = vmatpush1.msra.mxu0 0.0
      %516 = vmatprep.subr.mxu0 0.0
      %517 = vmatpush1.msra.mxu0 0.0
      %518 = vmatprep.subr.mxu0 0.0
      %519 = vmatpush1.msra.mxu0 0.0
      %520 = vmatprep.subr.mxu0 0.0
      %521 = vmatpush1.msra.mxu0 0.0
      %522 = vmatprep.subr.mxu0 0.0
      %523 = vmatpush1.msra.mxu0 0.0
      %524 = vmatprep.subr.mxu0 0.0
      %525 = vmatpush1.msra.mxu0 0.0
      %526 = vmatprep.subr.mxu0 0.0
      %527 = vmatpush1.msra.mxu0 0.0
      %528 = vmatprep.subr.mxu0 0.0
      %529 = vmatpush1.msra.mxu0 0.0
      %530 = vmatprep.subr.mxu0 0.0
      %531 = vmatpush1.msra.mxu0 0.0
      %532 = vmatprep.subr.mxu0 0.0
      %533 = vmatpush1.msra.mxu0 0.0
      %534 = vmatprep.subr.mxu0 0.0
      %535 = vmatpush1.msra.mxu0 0.0
      %536 = vmatprep.subr.mxu0 0.0
      %537 = vmatpush1.msra.mxu0 0.0
      %538 = vmatprep.subr.mxu0 0.0
      %539 = vmatpush1.msra.mxu0 0.0
      %540 = vmatprep.subr.mxu0 0.0
      %541 = vmatpush1.msra.mxu0 0.0
      %542 = vmatprep.subr.mxu0 0.0
      %543 = vmatpush1.msra.mxu0 0.0
      %544 = vmatprep.subr.mxu0 0.0
      %545 = vmatpush1.msra.mxu0 0.0
      %546 = vmatprep.subr.mxu0 0.0
      %547 = vmatpush1.msra.mxu0 0.0
      %548 = vmatprep.subr.mxu0 0.0
      %549 = vmatpush1.msra.mxu0 0.0
      %550 = vmatprep.subr.mxu0 0.0
      %551 = vmatpush1.msra.mxu0 0.0
      %552 = vmatprep.subr.mxu0 0.0
      %553 = vmatpush1.msra.mxu0 0.0
      %554 = vmatprep.subr.mxu0 0.0
      %555 = vmatpush1.msra.mxu0 0.0
      %556 = vmatprep.subr.mxu0 0.0
      %557 = vmatpush1.msra.mxu0 0.0
      %558 = vmatprep.subr.mxu0 0.0
      %559 = vmatpush1.msra.mxu0 0.0
      %560 = vmatprep.mubr.f32.mxu0 0.0
      %561 = vmatmul.mubr.f32.gmra.mrb[0].mxu0 %v421
      %v562 = vpop.f32.mrb[0].mxu0
      %v563 = vadd.f32 %v417, %v562
      %v564 = vpop.f32.mrb[0].mxu0
      %565 = vmatprep.mubr.f32.mxu0 0.0
      %566 = vmatmul.mubr.f32.gmra.mrb[0].mxu0 %v424
      %v567 = vpop.f32.mrb[0].mxu0
      %v568 = vadd.f32 %v417, %v567
      %v569 = vpop.f32.mrb[0].mxu0
      %570 = vmatprep.mubr.f32.mxu0 0.0
      %571 = vmatmul.mubr.f32.gmra.mrb[0].mxu0 %v427
      %v572 = vpop.f32.mrb[0].mxu0
      %v573 = vadd.f32 %v417, %v572
      %v574 = vpop.f32.mrb[0].mxu0
      %575 = vmatprep.mubr.f32.mxu0 0.0
      %576 = vmatmul.mubr.f32.gmra.mrb[0].mxu0 %v430
      %v577 = vpop.f32.mrb[0].mxu0
      %v578 = vadd.f32 %v417, %v577
      %v579 = vpop.f32.mrb[0].mxu0
      %580 = vmatprep.mubr.f32.mxu0 0.0
      %581 = vmatmul.mubr.f32.gmra.mrb[0].mxu0 %v433
      %v582 = vpop.f32.mrb[0].mxu0
      %v583 = vadd.f32 %v417, %v582
      %v584 = vpop.f32.mrb[0].mxu0
      %585 = vmatprep.mubr.f32.mxu0 0.0
      %586 = vmatmul.mubr.f32.gmra.mrb[0].mxu0 %v436
      %v587 = vpop.f32.mrb[0].mxu0
      %v588 = vadd.f32 %v417, %v587
      %v589 = vpop.f32.mrb[0].mxu0
      %590 = vmatprep.mubr.f32.mxu0 0.0
      %591 = vmatmul.mubr.f32.gmra.mrb[0].mxu0 %v439
      %v592 = vpop.f32.mrb[0].mxu0
      %v593 = vadd.f32 %v417, %v592
      %v594 = vpop.f32.mrb[0].mxu0
      %595 = vmatprep.mubr.f32.mxu0 0.0
      %596 = vmatmul.mubr.f32.gmra.mrb[0].mxu0 %v442
      %v597 = vpop.f32.mrb[0].mxu0
      %v598 = vadd.f32 %v417, %v597
      %v599 = vpop.f32.mrb[0].mxu0
      %600 = vmatprep.mubr.f32.mxu0 0.0
      %601 = vmatmul.mubr.f32.gmra.mrb[0].mxu0 %v445
      %v602 = vpop.f32.mrb[0].mxu0
      %v603 = vadd.f32 %v417, %v602
      %v604 = vpop.f32.mrb[0].mxu0
      %605 = vmatprep.mubr.f32.mxu0 0.0
      %606 = vmatmul.mubr.f32.gmra.mrb[0].mxu0 %v448
      %v607 = vpop.f32.mrb[0].mxu0
      %v608 = vadd.f32 %v417, %v607
      %v609 = vpop.f32.mrb[0].mxu0
      %610 = vmatprep.mubr.f32.mxu0 0.0
      %611 = vmatmul.mubr.f32.gmra.mrb[0].mxu0 %v451
      %v612 = vpop.f32.mrb[0].mxu0
      %v613 = vadd.f32 %v417, %v612
      %v614 = vpop.f32.mrb[0].mxu0
      %615 = vmatprep.mubr.f32.mxu0 0.0
      %616 = vmatmul.mubr.f32.gmra.mrb[0].mxu0 %v454
      %v617 = vpop.f32.mrb[0].mxu0
      %v618 = vadd.f32 %v417, %v617
      %v619 = vpop.f32.mrb[0].mxu0
      %620 = vmatprep.mubr.f32.mxu0 0.0
      %621 = vmatmul.mubr.f32.gmra.mrb[0].mxu0 %v457
      %v622 = vpop.f32.mrb[0].mxu0
      %v623 = vadd.f32 %v417, %v622
      %v624 = vpop.f32.mrb[0].mxu0
      %625 = vmatprep.mubr.f32.mxu0 0.0
      %626 = vmatmul.mubr.f32.gmra.mrb[0].mxu0 %v460
      %v627 = vpop.f32.mrb[0].mxu0
      %v628 = vadd.f32 %v417, %v627
      %v629 = vpop.f32.mrb[0].mxu0
      %630 = vmatprep.mubr.f32.mxu0 0.0
      %631 = vmatmul.mubr.f32.gmra.mrb[0].mxu0 %v463
      %v632 = vpop.f32.mrb[0].mxu0
      %v633 = vadd.f32 %v417, %v632
      %v634 = vpop.f32.mrb[0].mxu0
      %635 = vmatprep.mubr.f32.mxu0 0.0
      %636 = vmatmul.mubr.f32.gmra.mrb[0].mxu0 %v466
      %v637 = vpop.f32.mrb[0].mxu0
      %v638 = vadd.f32 %v417, %v637
      %v639 = vpop.f32.mrb[0].mxu0
      %640 = vmatprep.mubr.f32.mxu0 0.0
      %641 = vmatmul.mubr.f32.gmra.mrb[0].mxu0 %v469
      %v642 = vpop.f32.mrb[0].mxu0
      %v643 = vadd.f32 %v417, %v642
      %v644 = vpop.f32.mrb[0].mxu0
      %645 = vmatprep.mubr.f32.mxu0 0.0
      %646 = vmatmul.mubr.f32.gmra.mrb[0].mxu0 %v472
      %v647 = vpop.f32.mrb[0].mxu0
      %v648 = vadd.f32 %v417, %v647
      %v649 = vpop.f32.mrb[0].mxu0
      %650 = vmatprep.mubr.f32.mxu0 0.0
      %651 = vmatmul.mubr.f32.gmra.mrb[0].mxu0 %v475
      %v652 = vpop.f32.mrb[0].mxu0
      %v653 = vadd.f32 %v417, %v652
      %v654 = vpop.f32.mrb[0].mxu0
      %655 = vmatprep.mubr.f32.mxu0 0.0
      %656 = vmatmul.mubr.f32.gmra.mrb[0].mxu0 %v478
      %v657 = vpop.f32.mrb[0].mxu0
      %v658 = vadd.f32 %v417, %v657
      %v659 = vpop.f32.mrb[0].mxu0
      %660 = vmatprep.mubr.f32.mxu0 0.0
      %661 = vmatmul.mubr.f32.gmra.mrb[0].mxu0 %v481
      %v662 = vpop.f32.mrb[0].mxu0
      %v663 = vadd.f32 %v417, %v662
      %v664 = vpop.f32.mrb[0].mxu0
      %665 = vmatprep.mubr.f32.mxu0 0.0
      %666 = vmatmul.mubr.f32.gmra.mrb[0].mxu0 %v484
      %v667 = vpop.f32.mrb[0].mxu0
      %v668 = vadd.f32 %v417, %v667
      %v669 = vpop.f32.mrb[0].mxu0
      %670 = vmatprep.mubr.f32.mxu0 0.0
      %671 = vmatmul.mubr.f32.gmra.mrb[0].mxu0 %v487
      %v672 = vpop.f32.mrb[0].mxu0
      %v673 = vadd.f32 %v417, %v672
      %v674 = vpop.f32.mrb[0].mxu0
      %675 = vmatprep.mubr.f32.mxu0 0.0
      %676 = vmatmul.mubr.f32.gmra.mrb[0].mxu0 %v490
      %v677 = vpop.f32.mrb[0].mxu0
      %v678 = vadd.f32 %v417, %v677
      %v679 = vpop.f32.mrb[0].mxu0
      %680 = vdwg.mxu0
      %v681 = vxor.u32 %v563, 2147483648
      %v682 = vxor.u32 %v568, 2147483648
      %v683 = vxor.u32 %v573, 2147483648
      %v684 = vxor.u32 %v578, 2147483648
      %v685 = vxor.u32 %v583, 2147483648
      %v686 = vxor.u32 %v588, 2147483648
      %v687 = vxor.u32 %v593, 2147483648
      %v688 = vxor.u32 %v598, 2147483648
      %v689 = vxor.u32 %v603, 2147483648
      %v690 = vxor.u32 %v608, 2147483648
      %v691 = vxor.u32 %v613, 2147483648
      %v692 = vxor.u32 %v618, 2147483648
      %v693 = vxor.u32 %v623, 2147483648
      %v694 = vxor.u32 %v628, 2147483648
      %v695 = vxor.u32 %v633, 2147483648
      %v696 = vxor.u32 %v638, 2147483648
      %v697 = vxor.u32 %v643, 2147483648
      %v698 = vxor.u32 %v648, 2147483648
      %v699 = vxor.u32 %v653, 2147483648
      %v700 = vxor.u32 %v658, 2147483648
      %v701 = vxor.u32 %v663, 2147483648
      %v702 = vxor.u32 %v668, 2147483648
      %v703 = vxor.u32 %v673, 2147483648
      %v704 = vxor.u32 %v678, 2147483648
      %v705 = vmul.f32 %v681, 1.442695
      %v706 = vpow.pop %v705
      %v707 = vmul.f32 %v682, 1.442695
      %v708 = vpow.pop %v707
      %v709 = vmul.f32 %v683, 1.442695
      %v710 = vpow.pop %v709
      %v711 = vmul.f32 %v684, 1.442695
      %v712 = vpow.pop %v711
      %v713 = vmul.f32 %v685, 1.442695
      %v714 = vpow.pop %v713
      %v715 = vmul.f32 %v686, 1.442695
      %v716 = vpow.pop %v715
      %v717 = vmul.f32 %v687, 1.442695
      %v718 = vpow.pop %v717
      %v719 = vmul.f32 %v688, 1.442695
      %v720 = vpow.pop %v719
      %v721 = vmul.f32 %v689, 1.442695
      %v722 = vpow.pop %v721
      %v723 = vmul.f32 %v690, 1.442695
      %v724 = vpow.pop %v723
      %v725 = vmul.f32 %v691, 1.442695
      %v726 = vpow.pop %v725
      %v727 = vmul.f32 %v692, 1.442695
      %v728 = vpow.pop %v727
      %v729 = vmul.f32 %v693, 1.442695
      %v730 = vpow.pop %v729
      %v731 = vmul.f32 %v694, 1.442695
      %v732 = vpow.pop %v731
      %v733 = vmul.f32 %v695, 1.442695
      %v734 = vpow.pop %v733
      %v735 = vmul.f32 %v696, 1.442695
      %v736 = vpow.pop %v735
      %v737 = vmul.f32 %v697, 1.442695
      %v738 = vpow.pop %v737
      %v739 = vmul.f32 %v698, 1.442695
      %v740 = vpow.pop %v739
      %v741 = vmul.f32 %v699, 1.442695
      %v742 = vpow.pop %v741
      %v743 = vmul.f32 %v700, 1.442695
      %v744 = vpow.pop %v743
      %v745 = vmul.f32 %v701, 1.442695
      %v746 = vpow.pop %v745
      %v747 = vmul.f32 %v702, 1.442695
      %v748 = vpow.pop %v747
      %v749 = vmul.f32 %v703, 1.442695
      %v750 = vpow.pop %v749
      %v751 = vmul.f32 %v704, 1.442695
      %v752 = vpow.pop %v751
      %v753 = vadd.f32 %v706, 1.0
      %v754 = vadd.f32 %v708, 1.0
      %v755 = vadd.f32 %v710, 1.0
      %v756 = vadd.f32 %v712, 1.0
      %v757 = vadd.f32 %v714, 1.0
      %v758 = vadd.f32 %v716, 1.0
      %v759 = vadd.f32 %v718, 1.0
      %v760 = vadd.f32 %v720, 1.0
      %v761 = vadd.f32 %v722, 1.0
      %v762 = vadd.f32 %v724, 1.0
      %v763 = vadd.f32 %v726, 1.0
      %v764 = vadd.f32 %v728, 1.0
      %v765 = vadd.f32 %v730, 1.0
      %v766 = vadd.f32 %v732, 1.0
      %v767 = vadd.f32 %v734, 1.0
      %v768 = vadd.f32 %v736, 1.0
      %v769 = vadd.f32 %v738, 1.0
      %v770 = vadd.f32 %v740, 1.0
      %v771 = vadd.f32 %v742, 1.0
      %v772 = vadd.f32 %v744, 1.0
      %v773 = vadd.f32 %v746, 1.0
      %v774 = vadd.f32 %v748, 1.0
      %v775 = vadd.f32 %v750, 1.0
      %v776 = vadd.f32 %v752, 1.0
      %v777 = vrcp.pop %v753
      %v778 = vmul.f32 1.0, %v777
      %v779 = vrcp.pop %v754
      %v780 = vmul.f32 1.0, %v779
      %v781 = vrcp.pop %v755
      %v782 = vmul.f32 1.0, %v781
      %v783 = vrcp.pop %v756
      %v784 = vmul.f32 1.0, %v783
      %v785 = vrcp.pop %v757
      %v786 = vmul.f32 1.0, %v785
      %v787 = vrcp.pop %v758
      %v788 = vmul.f32 1.0, %v787
      %v789 = vrcp.pop %v759
      %v790 = vmul.f32 1.0, %v789
      %v791 = vrcp.pop %v760
      %v792 = vmul.f32 1.0, %v791
      %v793 = vrcp.pop %v761
      %v794 = vmul.f32 1.0, %v793
      %v795 = vrcp.pop %v762
      %v796 = vmul.f32 1.0, %v795
      %v797 = vrcp.pop %v763
      %v798 = vmul.f32 1.0, %v797
      %v799 = vrcp.pop %v764
      %v800 = vmul.f32 1.0, %v799
      %v801 = vrcp.pop %v765
      %v802 = vmul.f32 1.0, %v801
      %v803 = vrcp.pop %v766
      %v804 = vmul.f32 1.0, %v803
      %v805 = vrcp.pop %v767
      %v806 = vmul.f32 1.0, %v805
      %v807 = vrcp.pop %v768
      %v808 = vmul.f32 1.0, %v807
      %v809 = vrcp.pop %v769
      %v810 = vmul.f32 1.0, %v809
      %v811 = vrcp.pop %v770
      %v812 = vmul.f32 1.0, %v811
      %v813 = vrcp.pop %v771
      %v814 = vmul.f32 1.0, %v813
      %v815 = vrcp.pop %v772
      %v816 = vmul.f32 1.0, %v815
      %v817 = vrcp.pop %v773
      %v818 = vmul.f32 1.0, %v817
      %v819 = vrcp.pop %v774
      %v820 = vmul.f32 1.0, %v819
      %v821 = vrcp.pop %v775
      %v822 = vmul.f32 1.0, %v821
      %v823 = vrcp.pop %v776
      %v824 = vmul.f32 1.0, %v823
      %v825 = vmul.f32 %v563, %v778
      %v826 = vmul.f32 %v568, %v780
      %v827 = vmul.f32 %v573, %v782
      %v828 = vmul.f32 %v578, %v784
      %v829 = vmul.f32 %v583, %v786
      %v830 = vmul.f32 %v588, %v788
      %v831 = vmul.f32 %v593, %v790
      %v832 = vmul.f32 %v598, %v792
      %v833 = vmul.f32 %v603, %v794
      %v834 = vmul.f32 %v608, %v796
      %v835 = vmul.f32 %v613, %v798
      %v836 = vmul.f32 %v618, %v800
      %v837 = vmul.f32 %v623, %v802
      %v838 = vmul.f32 %v628, %v804
      %v839 = vmul.f32 %v633, %v806
      %v840 = vmul.f32 %v638, %v808
      %v841 = vmul.f32 %v643, %v810
      %v842 = vmul.f32 %v648, %v812
      %v843 = vmul.f32 %v653, %v814
      %v844 = vmul.f32 %v658, %v816
      %v845 = vmul.f32 %v663, %v818
      %v846 = vmul.f32 %v668, %v820
      %v847 = vmul.f32 %v673, %v822
      %v848 = vmul.f32 %v678, %v824
      %v849 = vsel %vm384, 1, 0
      %v850 = vsel %vm385, 1, 0
      %v851 = vsel %vm386, 1, 0
      %vm852 = vcmp.eq.s32.totalorder %v849, 1
      %vm853 = vcmp.eq.s32.totalorder %v850, 1
      %vm854 = vcmp.eq.s32.totalorder %v851, 1
      %v855 = vsel %vm852, %v825, 0.0
      %v856 = vsel %vm853, %v826, 0.0
      %v857 = vsel %vm854, %v827, 0.0
      %v858 = vsel %vm852, %v828, 0.0
      %v859 = vsel %vm853, %v829, 0.0
      %v860 = vsel %vm854, %v830, 0.0
      %v861 = vsel %vm852, %v831, 0.0
      %v862 = vsel %vm853, %v832, 0.0
      %v863 = vsel %vm854, %v833, 0.0
      %v864 = vsel %vm852, %v834, 0.0
      %v865 = vsel %vm853, %v835, 0.0
      %v866 = vsel %vm854, %v836, 0.0
      %v867 = vsel %vm852, %v837, 0.0
      %v868 = vsel %vm853, %v838, 0.0
      %v869 = vsel %vm854, %v839, 0.0
      %v870 = vsel %vm852, %v840, 0.0
      %v871 = vsel %vm853, %v841, 0.0
      %v872 = vsel %vm854, %v842, 0.0
      %v873 = vsel %vm852, %v843, 0.0
      %v874 = vsel %vm853, %v844, 0.0
      %v875 = vsel %vm854, %v845, 0.0
      %v876 = vsel %vm852, %v846, 0.0
      %v877 = vsel %vm853, %v847, 0.0
      %v878 = vsel %vm854, %v848, 0.0
      %879 = vst.msk [vmem:[#allocation2] sm:$0xff] %vm419, %v855
      %880 = vst.msk [vmem:[#allocation2 + $0x8] sm:$0xff] %vm419, %v856
      %881 = vst.msk [vmem:[#allocation2 + $0x10] sm:$0xff] %vm419, %v857
      %882 = vst.msk [vmem:[#allocation2 + $0x18] sm:$0xff] %vm419, %v858
      %883 = vst.msk [vmem:[#allocation2 + $0x20] sm:$0xff] %vm419, %v859
      %884 = vst.msk [vmem:[#allocation2 + $0x28] sm:$0xff] %vm419, %v860
      %885 = vst.msk [vmem:[#allocation2 + $0x30] sm:$0xff] %vm419, %v861
      %886 = vst.msk [vmem:[#allocation2 + $0x38] sm:$0xff] %vm419, %v862
      %887 = vst.msk [vmem:[#allocation2 + $0x40] sm:$0xff] %vm419, %v863
      %888 = vst.msk [vmem:[#allocation2 + $0x48] sm:$0xff] %vm419, %v864
      %889 = vst.msk [vmem:[#allocation2 + $0x50] sm:$0xff] %vm419, %v865
      %890 = vst.msk [vmem:[#allocation2 + $0x58] sm:$0xff] %vm419, %v866
      %891 = vst.msk [vmem:[#allocation2 + $0x60] sm:$0xff] %vm419, %v867
      %892 = vst.msk [vmem:[#allocation2 + $0x68] sm:$0xff] %vm419, %v868
      %893 = vst.msk [vmem:[#allocation2 + $0x70] sm:$0xff] %vm419, %v869
      %894 = vst.msk [vmem:[#allocation2 + $0x78] sm:$0xff] %vm419, %v870
      %895 = vst.msk [vmem:[#allocation2 + $0x80] sm:$0xff] %vm419, %v871
      %896 = vst.msk [vmem:[#allocation2 + $0x88] sm:$0xff] %vm419, %v872
      %897 = vst.msk [vmem:[#allocation2 + $0x90] sm:$0xff] %vm419, %v873
      %898 = vst.msk [vmem:[#allocation2 + $0x98] sm:$0xff] %vm419, %v874
      %899 = vst.msk [vmem:[#allocation2 + $0xa0] sm:$0xff] %vm419, %v875
      %900 = vst.msk [vmem:[#allocation2 + $0xa8] sm:$0xff] %vm419, %v876
      %901 = vst.msk [vmem:[#allocation2 + $0xb0] sm:$0xff] %vm419, %v877
      %902 = vst.msk [vmem:[#allocation2 + $0xb8] sm:$0xff] %vm419, %v878
      %v903 = vld [vmem:[%s359] sm:$0xff]
      %v904 = vld [vmem:[%s359 + $0x8] sm:$0xff]
      %v905 = vld [vmem:[%s359 + $0x10] sm:$0xff]
      %v906 = vld [vmem:[%s359 + $0x18] sm:$0xff]
      %v907 = vld [vmem:[%s359 + $0x20] sm:$0xff]
      %v908 = vld [vmem:[%s359 + $0x28] sm:$0xff]
      %v909 = vld [vmem:[%s359 + $0x30] sm:$0xff]
      %v910 = vld [vmem:[%s359 + $0x38] sm:$0xff]
      %v911 = vld [vmem:[%s359 + $0x40] sm:$0xff]
      %v912 = vld [vmem:[%s359 + $0x48] sm:$0xff]
      %v913 = vld [vmem:[%s359 + $0x50] sm:$0xff]
      %v914 = vld [vmem:[%s359 + $0x58] sm:$0xff]
      %v915 = vld [vmem:[%s2] sm:$0xf]
      %v917 = vsel %vm419, %v903, 0
      %v920 = vsel %vm419, %v904, 0
      %v923 = vsel %vm419, %v905, 0
      %v926 = vsel %vm419, %v906, 0
      %v929 = vsel %vm419, %v907, 0
      %v932 = vsel %vm419, %v908, 0
      %v935 = vsel %vm419, %v909, 0
      %v938 = vsel %vm419, %v910, 0
      %v941 = vsel %vm419, %v911, 0
      %v944 = vsel %vm419, %v912, 0
      %v947 = vsel %vm419, %v913, 0
      %v950 = vsel %vm419, %v914, 0
      %v953 = vsel %vm492, %v915, 0
      %955 = vmatprep.subr.mxu0 0.0
      %956 = vmatpush1.msra.mxu0 %v953
      %957 = vmatprep.subr.mxu0 0.0
      %958 = vmatpush1.msra.mxu0 0.0
      %959 = vmatprep.subr.mxu0 0.0
      %960 = vmatpush1.msra.mxu0 0.0
      %961 = vmatprep.subr.mxu0 0.0
      %962 = vmatpush1.msra.mxu0 0.0
      %963 = vmatprep.subr.mxu0 0.0
      %964 = vmatpush1.msra.mxu0 0.0
      %965 = vmatprep.subr.mxu0 0.0
      %966 = vmatpush1.msra.mxu0 0.0
      %967 = vmatprep.subr.mxu0 0.0
      %968 = vmatpush1.msra.mxu0 0.0
      %969 = vmatprep.subr.mxu0 0.0
      %970 = vmatpush1.msra.mxu0 0.0
      %971 = vmatprep.subr.mxu0 0.0
      %972 = vmatpush1.msra.mxu0 0.0
      %973 = vmatprep.subr.mxu0 0.0
      %974 = vmatpush1.msra.mxu0 0.0
      %975 = vmatprep.subr.mxu0 0.0
      %976 = vmatpush1.msra.mxu0 0.0
      %977 = vmatprep.subr.mxu0 0.0
      %978 = vmatpush1.msra.mxu0 0.0
      %979 = vmatprep.subr.mxu0 0.0
      %980 = vmatpush1.msra.mxu0 0.0
      %981 = vmatprep.subr.mxu0 0.0
      %982 = vmatpush1.msra.mxu0 0.0
      %983 = vmatprep.subr.mxu0 0.0
      %984 = vmatpush1.msra.mxu0 0.0
      %985 = vmatprep.subr.mxu0 0.0
      %986 = vmatpush1.msra.mxu0 0.0
      %987 = vmatprep.subr.mxu0 0.0
      %988 = vmatpush1.msra.mxu0 0.0
      %989 = vmatprep.subr.mxu0 0.0
      %990 = vmatpush1.msra.mxu0 0.0
      %991 = vmatprep.subr.mxu0 0.0
      %992 = vmatpush1.msra.mxu0 0.0
      %993 = vmatprep.subr.mxu0 0.0
      %994 = vmatpush1.msra.mxu0 0.0
      %995 = vmatprep.subr.mxu0 0.0
      %996 = vmatpush1.msra.mxu0 0.0
      %997 = vmatprep.subr.mxu0 0.0
      %998 = vmatpush1.msra.mxu0 0.0
      %999 = vmatprep.subr.mxu0 0.0
      %1000 = vmatpush1.msra.mxu0 0.0
      %1001 = vmatprep.subr.mxu0 0.0
      %1002 = vmatpush1.msra.mxu0 0.0
      %1003 = vmatprep.subr.mxu0 0.0
      %1004 = vmatpush1.msra.mxu0 0.0
      %1005 = vmatprep.subr.mxu0 0.0
      %1006 = vmatpush1.msra.mxu0 0.0
      %1007 = vmatprep.subr.mxu0 0.0
      %1008 = vmatpush1.msra.mxu0 0.0
      %1009 = vmatprep.subr.mxu0 0.0
      %1010 = vmatpush1.msra.mxu0 0.0
      %1011 = vmatprep.subr.mxu0 0.0
      %1012 = vmatpush1.msra.mxu0 0.0
      %1013 = vmatprep.subr.mxu0 0.0
      %1014 = vmatpush1.msra.mxu0 0.0
      %1015 = vmatprep.subr.mxu0 0.0
      %1016 = vmatpush1.msra.mxu0 0.0
      %1017 = vmatprep.subr.mxu0 0.0
      %1018 = vmatpush1.msra.mxu0 0.0
      %1019 = vmatprep.mubr.f32.mxu0 0.0
      %1020 = vmatmul.mubr.f32.gmra.mrb[0].mxu0 %v917
      %v1021 = vpop.f32.mrb[0].mxu0
      %v1022 = vadd.f32 %v417, %v1021
      %v1023 = vpop.f32.mrb[0].mxu0
      %1024 = vmatprep.mubr.f32.mxu0 0.0
      %1025 = vmatmul.mubr.f32.gmra.mrb[0].mxu0 %v920
      %v1026 = vpop.f32.mrb[0].mxu0
      %v1027 = vadd.f32 %v417, %v1026
      %v1028 = vpop.f32.mrb[0].mxu0
      %1029 = vmatprep.mubr.f32.mxu0 0.0
      %1030 = vmatmul.mubr.f32.gmra.mrb[0].mxu0 %v923
      %v1031 = vpop.f32.mrb[0].mxu0
      %v1032 = vadd.f32 %v417, %v1031
      %v1033 = vpop.f32.mrb[0].mxu0
      %1034 = vmatprep.mubr.f32.mxu0 0.0
      %1035 = vmatmul.mubr.f32.gmra.mrb[0].mxu0 %v926
      %v1036 = vpop.f32.mrb[0].mxu0
      %v1037 = vadd.f32 %v417, %v1036
      %v1038 = vpop.f32.mrb[0].mxu0
      %1039 = vmatprep.mubr.f32.mxu0 0.0
      %1040 = vmatmul.mubr.f32.gmra.mrb[0].mxu0 %v929
      %v1041 = vpop.f32.mrb[0].mxu0
      %v1042 = vadd.f32 %v417, %v1041
      %v1043 = vpop.f32.mrb[0].mxu0
      %1044 = vmatprep.mubr.f32.mxu0 0.0
      %1045 = vmatmul.mubr.f32.gmra.mrb[0].mxu0 %v932
      %v1046 = vpop.f32.mrb[0].mxu0
      %v1047 = vadd.f32 %v417, %v1046
      %v1048 = vpop.f32.mrb[0].mxu0
      %1049 = vmatprep.mubr.f32.mxu0 0.0
      %1050 = vmatmul.mubr.f32.gmra.mrb[0].mxu0 %v935
      %v1051 = vpop.f32.mrb[0].mxu0
      %v1052 = vadd.f32 %v417, %v1051
      %v1053 = vpop.f32.mrb[0].mxu0
      %1054 = vmatprep.mubr.f32.mxu0 0.0
      %1055 = vmatmul.mubr.f32.gmra.mrb[0].mxu0 %v938
      %v1056 = vpop.f32.mrb[0].mxu0
      %v1057 = vadd.f32 %v417, %v1056
      %v1058 = vpop.f32.mrb[0].mxu0
      %1059 = vmatprep.mubr.f32.mxu0 0.0
      %1060 = vmatmul.mubr.f32.gmra.mrb[0].mxu0 %v941
      %v1061 = vpop.f32.mrb[0].mxu0
      %v1062 = vadd.f32 %v417, %v1061
      %v1063 = vpop.f32.mrb[0].mxu0
      %1064 = vmatprep.mubr.f32.mxu0 0.0
      %1065 = vmatmul.mubr.f32.gmra.mrb[0].mxu0 %v944
      %v1066 = vpop.f32.mrb[0].mxu0
      %v1067 = vadd.f32 %v417, %v1066
      %v1068 = vpop.f32.mrb[0].mxu0
      %1069 = vmatprep.mubr.f32.mxu0 0.0
      %1070 = vmatmul.mubr.f32.gmra.mrb[0].mxu0 %v947
      %v1071 = vpop.f32.mrb[0].mxu0
      %v1072 = vadd.f32 %v417, %v1071
      %v1073 = vpop.f32.mrb[0].mxu0
      %1074 = vmatprep.mubr.f32.mxu0 0.0
      %1075 = vmatmul.mubr.f32.gmra.mrb[0].mxu0 %v950
      %v1076 = vpop.f32.mrb[0].mxu0
      %v1077 = vadd.f32 %v417, %v1076
      %v1078 = vpop.f32.mrb[0].mxu0
      %1079 = vdwg.mxu0
      %v1080 = vxor.u32 %v1022, 2147483648
      %v1081 = vxor.u32 %v1027, 2147483648
      %v1082 = vxor.u32 %v1032, 2147483648
      %v1083 = vxor.u32 %v1037, 2147483648
      %v1084 = vxor.u32 %v1042, 2147483648
      %v1085 = vxor.u32 %v1047, 2147483648
      %v1086 = vxor.u32 %v1052, 2147483648
      %v1087 = vxor.u32 %v1057, 2147483648
      %v1088 = vxor.u32 %v1062, 2147483648
      %v1089 = vxor.u32 %v1067, 2147483648
      %v1090 = vxor.u32 %v1072, 2147483648
      %v1091 = vxor.u32 %v1077, 2147483648
      %v1092 = vmul.f32 %v1080, 1.442695
      %v1093 = vpow.pop %v1092
      %v1094 = vmul.f32 %v1081, 1.442695
      %v1095 = vpow.pop %v1094
      %v1096 = vmul.f32 %v1082, 1.442695
      %v1097 = vpow.pop %v1096
      %v1098 = vmul.f32 %v1083, 1.442695
      %v1099 = vpow.pop %v1098
      %v1100 = vmul.f32 %v1084, 1.442695
      %v1101 = vpow.pop %v1100
      %v1102 = vmul.f32 %v1085, 1.442695
      %v1103 = vpow.pop %v1102
      %v1104 = vmul.f32 %v1086, 1.442695
      %v1105 = vpow.pop %v1104
      %v1106 = vmul.f32 %v1087, 1.442695
      %v1107 = vpow.pop %v1106
      %v1108 = vmul.f32 %v1088, 1.442695
      %v1109 = vpow.pop %v1108
      %v1110 = vmul.f32 %v1089, 1.442695
      %v1111 = vpow.pop %v1110
      %v1112 = vmul.f32 %v1090, 1.442695
      %v1113 = vpow.pop %v1112
      %v1114 = vmul.f32 %v1091, 1.442695
      %v1115 = vpow.pop %v1114
      %v1116 = vadd.f32 %v1093, 1.0
      %v1117 = vadd.f32 %v1095, 1.0
      %v1118 = vadd.f32 %v1097, 1.0
      %v1119 = vadd.f32 %v1099, 1.0
      %v1120 = vadd.f32 %v1101, 1.0
      %v1121 = vadd.f32 %v1103, 1.0
      %v1122 = vadd.f32 %v1105, 1.0
      %v1123 = vadd.f32 %v1107, 1.0
      %v1124 = vadd.f32 %v1109, 1.0
      %v1125 = vadd.f32 %v1111, 1.0
      %v1126 = vadd.f32 %v1113, 1.0
      %v1127 = vadd.f32 %v1115, 1.0
      %v1128 = vrcp.pop %v1116
      %v1129 = vmul.f32 1.0, %v1128
      %v1130 = vrcp.pop %v1117
      %v1131 = vmul.f32 1.0, %v1130
      %v1132 = vrcp.pop %v1118
      %v1133 = vmul.f32 1.0, %v1132
      %v1134 = vrcp.pop %v1119
      %v1135 = vmul.f32 1.0, %v1134
      %v1136 = vrcp.pop %v1120
      %v1137 = vmul.f32 1.0, %v1136
      %v1138 = vrcp.pop %v1121
      %v1139 = vmul.f32 1.0, %v1138
      %v1140 = vrcp.pop %v1122
      %v1141 = vmul.f32 1.0, %v1140
      %v1142 = vrcp.pop %v1123
      %v1143 = vmul.f32 1.0, %v1142
      %v1144 = vrcp.pop %v1124
      %v1145 = vmul.f32 1.0, %v1144
      %v1146 = vrcp.pop %v1125
      %v1147 = vmul.f32 1.0, %v1146
      %v1148 = vrcp.pop %v1126
      %v1149 = vmul.f32 1.0, %v1148
      %v1150 = vrcp.pop %v1127
      %v1151 = vmul.f32 1.0, %v1150
      %v1152 = vmul.f32 %v1022, %v1129
      %v1153 = vmul.f32 %v1027, %v1131
      %v1154 = vmul.f32 %v1032, %v1133
      %v1155 = vmul.f32 %v1037, %v1135
      %v1156 = vmul.f32 %v1042, %v1137
      %v1157 = vmul.f32 %v1047, %v1139
      %v1158 = vmul.f32 %v1052, %v1141
      %v1159 = vmul.f32 %v1057, %v1143
      %v1160 = vmul.f32 %v1062, %v1145
      %v1161 = vmul.f32 %v1067, %v1147
      %v1162 = vmul.f32 %v1072, %v1149
      %v1163 = vmul.f32 %v1077, %v1151
      %v1164 = vsel %vm852, %v1152, 0.0
      %v1165 = vsel %vm853, %v1153, 0.0
      %v1166 = vsel %vm854, %v1154, 0.0
      %v1167 = vsel %vm852, %v1155, 0.0
      %v1168 = vsel %vm853, %v1156, 0.0
      %v1169 = vsel %vm854, %v1157, 0.0
      %v1170 = vsel %vm852, %v1158, 0.0
      %v1171 = vsel %vm853, %v1159, 0.0
      %v1172 = vsel %vm854, %v1160, 0.0
      %v1173 = vsel %vm852, %v1161, 0.0
      %v1174 = vsel %vm853, %v1162, 0.0
      %v1175 = vsel %vm854, %v1163, 0.0
      %s1176 = scalar_lea.vmem [#allocation2], 192
      %1177 = vst.msk [vmem:[%s1176] sm:$0xff] %vm419, %v1164
      %1178 = vst.msk [vmem:[%s1176 + $0x8] sm:$0xff] %vm419, %v1165
      %1179 = vst.msk [vmem:[%s1176 + $0x10] sm:$0xff] %vm419, %v1166
      %1180 = vst.msk [vmem:[%s1176 + $0x18] sm:$0xff] %vm419, %v1167
      %1181 = vst.msk [vmem:[%s1176 + $0x20] sm:$0xff] %vm419, %v1168
      %1182 = vst.msk [vmem:[%s1176 + $0x28] sm:$0xff] %vm419, %v1169
      %1183 = vst.msk [vmem:[%s1176 + $0x30] sm:$0xff] %vm419, %v1170
      %1184 = vst.msk [vmem:[%s1176 + $0x38] sm:$0xff] %vm419, %v1171
      %1185 = vst.msk [vmem:[%s1176 + $0x40] sm:$0xff] %vm419, %v1172
      %1186 = vst.msk [vmem:[%s1176 + $0x48] sm:$0xff] %vm419, %v1173
      %1187 = vst.msk [vmem:[%s1176 + $0x50] sm:$0xff] %vm419, %v1174
      %1188 = vst.msk [vmem:[%s1176 + $0x58] sm:$0xff] %vm419, %v1175
      %p1189 = scmp.eq.s32.totalorder %s22, 0
      // Predicated region
      $region45: #{tpu_custom_call.1} parent=43 // pred_check
        %p1190 = pneg %p1189
      $region46: #{tpu_custom_call.1} parent=43 // pred_check_branch
        %1192 = sbr.rel (%p1190) target = $region48
      $region47: #{tpu_custom_call.1} parent=43 // pred_region
        %1193 = vst.msk [vmem:[#allocation2] sm:$0xff] %vm419, 0.0
        %1194 = vst.msk [vmem:[#allocation2 + $0x8] sm:$0xff] %vm419, 0.0
        %1195 = vst.msk [vmem:[#allocation2 + $0x10] sm:$0xff] %vm419, 0.0
        %1196 = vst.msk [vmem:[#allocation2 + $0x18] sm:$0xff] %vm419, 0.0
        %1197 = vst.msk [vmem:[#allocation2 + $0x20] sm:$0xff] %vm419, 0.0
        %1198 = vst.msk [vmem:[#allocation2 + $0x28] sm:$0xff] %vm419, 0.0
      $region48: #{tpu_custom_call.1} parent=43 // pred_fallthru
        _
      %p1199 = scmp.eq.s32.totalorder %s22, 1
      // Predicated region
      $region49: #{tpu_custom_call.1} parent=43 // pred_check
        %p1200 = pneg %p1199
      $region50: #{tpu_custom_call.1} parent=43 // pred_check_branch
        %1202 = sbr.rel (%p1200) target = $region52
      $region51: #{tpu_custom_call.1} parent=43 // pred_region
        %s1203 = scalar_lea.vmem [#allocation2], 240
        %1204 = vst.msk [vmem:[%s1203] sm:$0xff] %vm419, 0.0
        %1205 = vst.msk [vmem:[%s1203 + $0x8] sm:$0xff] %vm419, 0.0
        %1206 = vst.msk [vmem:[%s1203 + $0x10] sm:$0xff] %vm419, 0.0
        %1207 = vst.msk [vmem:[%s1203 + $0x18] sm:$0xff] %vm419, 0.0
        %1208 = vst.msk [vmem:[%s1203 + $0x20] sm:$0xff] %vm419, 0.0
        %1209 = vst.msk [vmem:[%s1203 + $0x28] sm:$0xff] %vm419, 0.0
      $region52: #{tpu_custom_call.1} parent=43 // pred_fallthru
        _
      %v1210 = vld [vmem:[%s4] sm:$0xff]
      %v1211 = vld [vmem:[%s4 + $0x8] sm:$0xff]
      %v1212 = vld [vmem:[%s4 + $0x10] sm:$0xff]
      %v1213 = vld [vmem:[%s4 + $0x18] sm:$0x1]
      %v1214 = vld [vmem:[#allocation2] sm:$0xff]
      %v1215 = vld [vmem:[#allocation2 + $0x8] sm:$0xff]
      %v1216 = vld [vmem:[#allocation2 + $0x18] sm:$0xff]
      %v1217 = vld [vmem:[#allocation2 + $0x20] sm:$0xff]
      %v1218 = vld [vmem:[#allocation2 + $0x30] sm:$0xff]
      %v1219 = vld [vmem:[#allocation2 + $0x38] sm:$0xff]
      %v1220 = vld [vmem:[#allocation2 + $0x48] sm:$0xff]
      %v1221 = vld [vmem:[#allocation2 + $0x50] sm:$0xff]
      %v1222 = vld [vmem:[#allocation2 + $0x60] sm:$0xff]
      %v1223 = vld [vmem:[#allocation2 + $0x68] sm:$0xff]
      %v1224 = vld [vmem:[#allocation2 + $0x78] sm:$0xff]
      %v1225 = vld [vmem:[#allocation2 + $0x80] sm:$0xff]
      %v1226 = vld [vmem:[#allocation2 + $0x90] sm:$0xff]
      %v1227 = vld [vmem:[#allocation2 + $0x98] sm:$0xff]
      %v1228 = vld [vmem:[#allocation2 + $0xa8] sm:$0xff]
      %v1229 = vld [vmem:[#allocation2 + $0xb0] sm:$0xff]
      %v1230 = vld [vmem:[#allocation2 + $0xc0] sm:$0xff]
      %v1231 = vld [vmem:[#allocation2 + $0xc8] sm:$0xff]
      %v1232 = vld [vmem:[#allocation2 + $0xd8] sm:$0xff]
      %v1233 = vld [vmem:[#allocation2 + $0xe0] sm:$0xff]
      %v1234 = vld [vmem:[#allocation2 + $0xf0] sm:$0xff]
      %v1235 = vld [vmem:[#allocation2 + $0xf8] sm:$0xff]
      %v1236 = vld [vmem:[#allocation2 + $0x108] sm:$0xff]
      %v1237 = vld [vmem:[#allocation2 + $0x110] sm:$0xff]
      %v1238 = vlaneseq
      %v1239 = vshrl.u32 %v1238, 7
      %v1240 = vsub.s32 0, %v1239
      %v1241 = vrot.slane %v1210, %v1240
      %v1242 = vmul.f32 %v1214, %v1241
      %v1243 = vmul.f32 %v1215, %v1241
      %v1244 = vmul.f32 %v1216, %v1241
      %v1245 = vmul.f32 %v1217, %v1241
      %v1246 = vmul.f32 %v1218, %v1241
      %v1247 = vmul.f32 %v1219, %v1241
      %v1248 = vmul.f32 %v1220, %v1241
      %v1249 = vmul.f32 %v1221, %v1241
      %v1250 = vmul.f32 %v1222, %v1241
      %v1251 = vmul.f32 %v1223, %v1241
      %v1252 = vmul.f32 %v1224, %v1241
      %v1253 = vmul.f32 %v1225, %v1241
      %v1254 = vmul.f32 %v1226, %v1241
      %v1255 = vmul.f32 %v1227, %v1241
      %v1256 = vmul.f32 %v1228, %v1241
      %v1257 = vmul.f32 %v1229, %v1241
      %v1258 = vadd.f32 %v1242, 0.0
      %v1259 = vadd.f32 %v1243, 0.0
      %v1260 = vadd.f32 %v1244, 0.0
      %v1261 = vadd.f32 %v1245, 0.0
      %v1262 = vadd.f32 %v1246, 0.0
      %v1263 = vadd.f32 %v1247, 0.0
      %v1264 = vadd.f32 %v1248, 0.0
      %v1265 = vadd.f32 %v1249, 0.0
      %v1266 = vadd.f32 %v1250, 0.0
      %v1267 = vadd.f32 %v1251, 0.0
      %v1268 = vadd.f32 %v1252, 0.0
      %v1269 = vadd.f32 %v1253, 0.0
      %v1270 = vadd.f32 %v1254, 0.0
      %v1271 = vadd.f32 %v1255, 0.0
      %v1272 = vadd.f32 %v1256, 0.0
      %v1273 = vadd.f32 %v1257, 0.0
      %v1274 = vlaneseq
      %v1275 = vshrl.u32 %v1274, 7
      %v1276 = vsub.s32 5, %v1275
      %v1277 = vrot.slane %v1210, %v1276
      %v1278 = vmul.f32 %v1216, %v1277
      %v1279 = vmul.f32 %v1217, %v1277
      %v1280 = vmul.f32 %v1218, %v1277
      %v1281 = vmul.f32 %v1219, %v1277
      %v1282 = vmul.f32 %v1220, %v1277
      %v1283 = vmul.f32 %v1221, %v1277
      %v1284 = vmul.f32 %v1222, %v1277
      %v1285 = vmul.f32 %v1223, %v1277
      %v1286 = vmul.f32 %v1224, %v1277
      %v1287 = vmul.f32 %v1225, %v1277
      %v1288 = vmul.f32 %v1226, %v1277
      %v1289 = vmul.f32 %v1227, %v1277
      %v1290 = vmul.f32 %v1228, %v1277
      %v1291 = vmul.f32 %v1229, %v1277
      %v1292 = vmul.f32 %v1230, %v1277
      %v1293 = vmul.f32 %v1231, %v1277
      %v1294 = vadd.f32 %v1258, %v1278
      %v1295 = vadd.f32 %v1259, %v1279
      %v1296 = vadd.f32 %v1260, %v1280
      %v1297 = vadd.f32 %v1261, %v1281
      %v1298 = vadd.f32 %v1262, %v1282
      %v1299 = vadd.f32 %v1263, %v1283
      %v1300 = vadd.f32 %v1264, %v1284
      %v1301 = vadd.f32 %v1265, %v1285
      %v1302 = vadd.f32 %v1266, %v1286
      %v1303 = vadd.f32 %v1267, %v1287
      %v1304 = vadd.f32 %v1268, %v1288
      %v1305 = vadd.f32 %v1269, %v1289
      %v1306 = vadd.f32 %v1270, %v1290
      %v1307 = vadd.f32 %v1271, %v1291
      %v1308 = vadd.f32 %v1272, %v1292
      %v1309 = vadd.f32 %v1273, %v1293
      %v1310 = vlaneseq
      %v1311 = vshrl.u32 %v1310, 7
      %v1312 = vsub.s32 2, %v1311
      %v1313 = vrot.slane %v1211, %v1312
      %v1314 = vmul.f32 %v1218, %v1313
      %v1315 = vmul.f32 %v1219, %v1313
      %v1316 = vmul.f32 %v1220, %v1313
      %v1317 = vmul.f32 %v1221, %v1313
      %v1318 = vmul.f32 %v1222, %v1313
      %v1319 = vmul.f32 %v1223, %v1313
      %v1320 = vmul.f32 %v1224, %v1313
      %v1321 = vmul.f32 %v1225, %v1313
      %v1322 = vmul.f32 %v1226, %v1313
      %v1323 = vmul.f32 %v1227, %v1313
      %v1324 = vmul.f32 %v1228, %v1313
      %v1325 = vmul.f32 %v1229, %v1313
      %v1326 = vmul.f32 %v1230, %v1313
      %v1327 = vmul.f32 %v1231, %v1313
      %v1328 = vmul.f32 %v1232, %v1313
      %v1329 = vmul.f32 %v1233, %v1313
      %v1330 = vadd.f32 %v1294, %v1314
      %v1331 = vadd.f32 %v1295, %v1315
      %v1332 = vadd.f32 %v1296, %v1316
      %v1333 = vadd.f32 %v1297, %v1317
      %v1334 = vadd.f32 %v1298, %v1318
      %v1335 = vadd.f32 %v1299, %v1319
      %v1336 = vadd.f32 %v1300, %v1320
      %v1337 = vadd.f32 %v1301, %v1321
      %v1338 = vadd.f32 %v1302, %v1322
      %v1339 = vadd.f32 %v1303, %v1323
      %v1340 = vadd.f32 %v1304, %v1324
      %v1341 = vadd.f32 %v1305, %v1325
      %v1342 = vadd.f32 %v1306, %v1326
      %v1343 = vadd.f32 %v1307, %v1327
      %v1344 = vadd.f32 %v1308, %v1328
      %v1345 = vadd.f32 %v1309, %v1329
      %v1346 = vlaneseq
      %v1347 = vshrl.u32 %v1346, 7
      %v1348 = vsub.s32 7, %v1347
      %v1349 = vrot.slane %v1211, %v1348
      %v1350 = vmul.f32 %v1220, %v1349
      %v1351 = vmul.f32 %v1221, %v1349
      %v1352 = vmul.f32 %v1222, %v1349
      %v1353 = vmul.f32 %v1223, %v1349
      %v1354 = vmul.f32 %v1224, %v1349
      %v1355 = vmul.f32 %v1225, %v1349
      %v1356 = vmul.f32 %v1226, %v1349
      %v1357 = vmul.f32 %v1227, %v1349
      %v1358 = vmul.f32 %v1228, %v1349
      %v1359 = vmul.f32 %v1229, %v1349
      %v1360 = vmul.f32 %v1230, %v1349
      %v1361 = vmul.f32 %v1231, %v1349
      %v1362 = vmul.f32 %v1232, %v1349
      %v1363 = vmul.f32 %v1233, %v1349
      %v1364 = vmul.f32 %v1234, %v1349
      %v1365 = vmul.f32 %v1235, %v1349
      %v1366 = vadd.f32 %v1330, %v1350
      %v1367 = vadd.f32 %v1331, %v1351
      %v1368 = vadd.f32 %v1332, %v1352
      %v1369 = vadd.f32 %v1333, %v1353
      %v1370 = vadd.f32 %v1334, %v1354
      %v1371 = vadd.f32 %v1335, %v1355
      %v1372 = vadd.f32 %v1336, %v1356
      %v1373 = vadd.f32 %v1337, %v1357
      %v1374 = vadd.f32 %v1338, %v1358
      %v1375 = vadd.f32 %v1339, %v1359
      %v1376 = vadd.f32 %v1340, %v1360
      %v1377 = vadd.f32 %v1341, %v1361
      %v1378 = vadd.f32 %v1342, %v1362
      %v1379 = vadd.f32 %v1343, %v1363
      %v1380 = vadd.f32 %v1344, %v1364
      %v1381 = vadd.f32 %v1345, %v1365
      %v1382 = vlaneseq
      %v1383 = vshrl.u32 %v1382, 7
      %v1384 = vsub.s32 4, %v1383
      %v1385 = vrot.slane %v1212, %v1384
      %v1386 = vmul.f32 %v1222, %v1385
      %v1387 = vmul.f32 %v1223, %v1385
      %v1388 = vmul.f32 %v1224, %v1385
      %v1389 = vmul.f32 %v1225, %v1385
      %v1390 = vmul.f32 %v1226, %v1385
      %v1391 = vmul.f32 %v1227, %v1385
      %v1392 = vmul.f32 %v1228, %v1385
      %v1393 = vmul.f32 %v1229, %v1385
      %v1394 = vmul.f32 %v1230, %v1385
      %v1395 = vmul.f32 %v1231, %v1385
      %v1396 = vmul.f32 %v1232, %v1385
      %v1397 = vmul.f32 %v1233, %v1385
      %v1398 = vmul.f32 %v1234, %v1385
      %v1399 = vmul.f32 %v1235, %v1385
      %v1400 = vmul.f32 %v1236, %v1385
      %v1401 = vmul.f32 %v1237, %v1385
      %v1402 = vadd.f32 %v1366, %v1386
      %v1403 = vadd.f32 %v1367, %v1387
      %v1404 = vadd.f32 %v1368, %v1388
      %v1405 = vadd.f32 %v1369, %v1389
      %v1406 = vadd.f32 %v1370, %v1390
      %v1407 = vadd.f32 %v1371, %v1391
      %v1408 = vadd.f32 %v1372, %v1392
      %v1409 = vadd.f32 %v1373, %v1393
      %v1410 = vadd.f32 %v1374, %v1394
      %v1411 = vadd.f32 %v1375, %v1395
      %v1412 = vadd.f32 %v1376, %v1396
      %v1413 = vadd.f32 %v1377, %v1397
      %v1414 = vadd.f32 %v1378, %v1398
      %v1415 = vadd.f32 %v1379, %v1399
      %v1416 = vadd.f32 %v1380, %v1400
      %v1417 = vadd.f32 %v1381, %v1401
      %v1418 = vld [vmem:[#allocation2 + $0x1] sm:$0xff]
      %v1419 = vld [vmem:[#allocation2 + $0x9] sm:$0xff]
      %v1420 = vld [vmem:[#allocation2 + $0x19] sm:$0xff]
      %v1421 = vld [vmem:[#allocation2 + $0x21] sm:$0xff]
      %v1422 = vld [vmem:[#allocation2 + $0x31] sm:$0xff]
      %v1423 = vld [vmem:[#allocation2 + $0x39] sm:$0xff]
      %v1424 = vld [vmem:[#allocation2 + $0x49] sm:$0xff]
      %v1425 = vld [vmem:[#allocation2 + $0x51] sm:$0xff]
      %v1426 = vld [vmem:[#allocation2 + $0x61] sm:$0xff]
      %v1427 = vld [vmem:[#allocation2 + $0x69] sm:$0xff]
      %v1428 = vld [vmem:[#allocation2 + $0x79] sm:$0xff]
      %v1429 = vld [vmem:[#allocation2 + $0x81] sm:$0xff]
      %v1430 = vld [vmem:[#allocation2 + $0x91] sm:$0xff]
      %v1431 = vld [vmem:[#allocation2 + $0x99] sm:$0xff]
      %v1432 = vld [vmem:[#allocation2 + $0xa9] sm:$0xff]
      %v1433 = vld [vmem:[#allocation2 + $0xb1] sm:$0xff]
      %v1434 = vld [vmem:[#allocation2 + $0xc1] sm:$0xff]
      %v1435 = vld [vmem:[#allocation2 + $0xc9] sm:$0xff]
      %v1436 = vld [vmem:[#allocation2 + $0xd9] sm:$0xff]
      %v1437 = vld [vmem:[#allocation2 + $0xe1] sm:$0xff]
      %v1438 = vld [vmem:[#allocation2 + $0xf1] sm:$0xff]
      %v1439 = vld [vmem:[#allocation2 + $0xf9] sm:$0xff]
      %v1440 = vld [vmem:[#allocation2 + $0x109] sm:$0xff]
      %v1441 = vld [vmem:[#allocation2 + $0x111] sm:$0xff]
      %v1442 = vlaneseq
      %v1443 = vshrl.u32 %v1442, 7
      %v1444 = vsub.s32 1, %v1443
      %v1445 = vrot.slane %v1210, %v1444
      %v1446 = vmul.f32 %v1418, %v1445
      %v1447 = vmul.f32 %v1419, %v1445
      %v1448 = vmul.f32 %v1420, %v1445
      %v1449 = vmul.f32 %v1421, %v1445
      %v1450 = vmul.f32 %v1422, %v1445
      %v1451 = vmul.f32 %v1423, %v1445
      %v1452 = vmul.f32 %v1424, %v1445
      %v1453 = vmul.f32 %v1425, %v1445
      %v1454 = vmul.f32 %v1426, %v1445
      %v1455 = vmul.f32 %v1427, %v1445
      %v1456 = vmul.f32 %v1428, %v1445
      %v1457 = vmul.f32 %v1429, %v1445
      %v1458 = vmul.f32 %v1430, %v1445
      %v1459 = vmul.f32 %v1431, %v1445
      %v1460 = vmul.f32 %v1432, %v1445
      %v1461 = vmul.f32 %v1433, %v1445
      %v1462 = vadd.f32 %v1402, %v1446
      %v1463 = vadd.f32 %v1403, %v1447
      %v1464 = vadd.f32 %v1404, %v1448
      %v1465 = vadd.f32 %v1405, %v1449
      %v1466 = vadd.f32 %v1406, %v1450
      %v1467 = vadd.f32 %v1407, %v1451
      %v1468 = vadd.f32 %v1408, %v1452
      %v1469 = vadd.f32 %v1409, %v1453
      %v1470 = vadd.f32 %v1410, %v1454
      %v1471 = vadd.f32 %v1411, %v1455
      %v1472 = vadd.f32 %v1412, %v1456
      %v1473 = vadd.f32 %v1413, %v1457
      %v1474 = vadd.f32 %v1414, %v1458
      %v1475 = vadd.f32 %v1415, %v1459
      %v1476 = vadd.f32 %v1416, %v1460
      %v1477 = vadd.f32 %v1417, %v1461
      %v1478 = vlaneseq
      %v1479 = vshrl.u32 %v1478, 7
      %v1480 = vsub.s32 6, %v1479
      %v1481 = vrot.slane %v1210, %v1480
      %v1482 = vmul.f32 %v1420, %v1481
      %v1483 = vmul.f32 %v1421, %v1481
      %v1484 = vmul.f32 %v1422, %v1481
      %v1485 = vmul.f32 %v1423, %v1481
      %v1486 = vmul.f32 %v1424, %v1481
      %v1487 = vmul.f32 %v1425, %v1481
      %v1488 = vmul.f32 %v1426, %v1481
      %v1489 = vmul.f32 %v1427, %v1481
      %v1490 = vmul.f32 %v1428, %v1481
      %v1491 = vmul.f32 %v1429, %v1481
      %v1492 = vmul.f32 %v1430, %v1481
      %v1493 = vmul.f32 %v1431, %v1481
      %v1494 = vmul.f32 %v1432, %v1481
      %v1495 = vmul.f32 %v1433, %v1481
      %v1496 = vmul.f32 %v1434, %v1481
      %v1497 = vmul.f32 %v1435, %v1481
      %v1498 = vadd.f32 %v1462, %v1482
      %v1499 = vadd.f32 %v1463, %v1483
      %v1500 = vadd.f32 %v1464, %v1484
      %v1501 = vadd.f32 %v1465, %v1485
      %v1502 = vadd.f32 %v1466, %v1486
      %v1503 = vadd.f32 %v1467, %v1487
      %v1504 = vadd.f32 %v1468, %v1488
      %v1505 = vadd.f32 %v1469, %v1489
      %v1506 = vadd.f32 %v1470, %v1490
      %v1507 = vadd.f32 %v1471, %v1491
      %v1508 = vadd.f32 %v1472, %v1492
      %v1509 = vadd.f32 %v1473, %v1493
      %v1510 = vadd.f32 %v1474, %v1494
      %v1511 = vadd.f32 %v1475, %v1495
      %v1512 = vadd.f32 %v1476, %v1496
      %v1513 = vadd.f32 %v1477, %v1497
      %v1514 = vlaneseq
      %v1515 = vshrl.u32 %v1514, 7
      %v1516 = vsub.s32 3, %v1515
      %v1517 = vrot.slane %v1211, %v1516
      %v1518 = vmul.f32 %v1422, %v1517
      %v1519 = vmul.f32 %v1423, %v1517
      %v1520 = vmul.f32 %v1424, %v1517
      %v1521 = vmul.f32 %v1425, %v1517
      %v1522 = vmul.f32 %v1426, %v1517
      %v1523 = vmul.f32 %v1427, %v1517
      %v1524 = vmul.f32 %v1428, %v1517
      %v1525 = vmul.f32 %v1429, %v1517
      %v1526 = vmul.f32 %v1430, %v1517
      %v1527 = vmul.f32 %v1431, %v1517
      %v1528 = vmul.f32 %v1432, %v1517
      %v1529 = vmul.f32 %v1433, %v1517
      %v1530 = vmul.f32 %v1434, %v1517
      %v1531 = vmul.f32 %v1435, %v1517
      %v1532 = vmul.f32 %v1436, %v1517
      %v1533 = vmul.f32 %v1437, %v1517
      %v1534 = vadd.f32 %v1498, %v1518
      %v1535 = vadd.f32 %v1499, %v1519
      %v1536 = vadd.f32 %v1500, %v1520
      %v1537 = vadd.f32 %v1501, %v1521
      %v1538 = vadd.f32 %v1502, %v1522
      %v1539 = vadd.f32 %v1503, %v1523
      %v1540 = vadd.f32 %v1504, %v1524
      %v1541 = vadd.f32 %v1505, %v1525
      %v1542 = vadd.f32 %v1506, %v1526
      %v1543 = vadd.f32 %v1507, %v1527
      %v1544 = vadd.f32 %v1508, %v1528
      %v1545 = vadd.f32 %v1509, %v1529
      %v1546 = vadd.f32 %v1510, %v1530
      %v1547 = vadd.f32 %v1511, %v1531
      %v1548 = vadd.f32 %v1512, %v1532
      %v1549 = vadd.f32 %v1513, %v1533
      %v1550 = vlaneseq
      %v1551 = vshrl.u32 %v1550, 7
      %v1552 = vsub.s32 0, %v1551
      %v1553 = vrot.slane %v1212, %v1552
      %v1554 = vmul.f32 %v1424, %v1553
      %v1555 = vmul.f32 %v1425, %v1553
      %v1556 = vmul.f32 %v1426, %v1553
      %v1557 = vmul.f32 %v1427, %v1553
      %v1558 = vmul.f32 %v1428, %v1553
      %v1559 = vmul.f32 %v1429, %v1553
      %v1560 = vmul.f32 %v1430, %v1553
      %v1561 = vmul.f32 %v1431, %v1553
      %v1562 = vmul.f32 %v1432, %v1553
      %v1563 = vmul.f32 %v1433, %v1553
      %v1564 = vmul.f32 %v1434, %v1553
      %v1565 = vmul.f32 %v1435, %v1553
      %v1566 = vmul.f32 %v1436, %v1553
      %v1567 = vmul.f32 %v1437, %v1553
      %v1568 = vmul.f32 %v1438, %v1553
      %v1569 = vmul.f32 %v1439, %v1553
      %v1570 = vadd.f32 %v1534, %v1554
      %v1571 = vadd.f32 %v1535, %v1555
      %v1572 = vadd.f32 %v1536, %v1556
      %v1573 = vadd.f32 %v1537, %v1557
      %v1574 = vadd.f32 %v1538, %v1558
      %v1575 = vadd.f32 %v1539, %v1559
      %v1576 = vadd.f32 %v1540, %v1560
      %v1577 = vadd.f32 %v1541, %v1561
      %v1578 = vadd.f32 %v1542, %v1562
      %v1579 = vadd.f32 %v1543, %v1563
      %v1580 = vadd.f32 %v1544, %v1564
      %v1581 = vadd.f32 %v1545, %v1565
      %v1582 = vadd.f32 %v1546, %v1566
      %v1583 = vadd.f32 %v1547, %v1567
      %v1584 = vadd.f32 %v1548, %v1568
      %v1585 = vadd.f32 %v1549, %v1569
      %v1586 = vlaneseq
      %v1587 = vshrl.u32 %v1586, 7
      %v1588 = vsub.s32 5, %v1587
      %v1589 = vrot.slane %v1212, %v1588
      %v1590 = vmul.f32 %v1426, %v1589
      %v1591 = vmul.f32 %v1427, %v1589
      %v1592 = vmul.f32 %v1428, %v1589
      %v1593 = vmul.f32 %v1429, %v1589
      %v1594 = vmul.f32 %v1430, %v1589
      %v1595 = vmul.f32 %v1431, %v1589
      %v1596 = vmul.f32 %v1432, %v1589
      %v1597 = vmul.f32 %v1433, %v1589
      %v1598 = vmul.f32 %v1434, %v1589
      %v1599 = vmul.f32 %v1435, %v1589
      %v1600 = vmul.f32 %v1436, %v1589
      %v1601 = vmul.f32 %v1437, %v1589
      %v1602 = vmul.f32 %v1438, %v1589
      %v1603 = vmul.f32 %v1439, %v1589
      %v1604 = vmul.f32 %v1440, %v1589
      %v1605 = vmul.f32 %v1441, %v1589
      %v1606 = vadd.f32 %v1570, %v1590
      %v1607 = vadd.f32 %v1571, %v1591
      %v1608 = vadd.f32 %v1572, %v1592
      %v1609 = vadd.f32 %v1573, %v1593
      %v1610 = vadd.f32 %v1574, %v1594
      %v1611 = vadd.f32 %v1575, %v1595
      %v1612 = vadd.f32 %v1576, %v1596
      %v1613 = vadd.f32 %v1577, %v1597
      %v1614 = vadd.f32 %v1578, %v1598
      %v1615 = vadd.f32 %v1579, %v1599
      %v1616 = vadd.f32 %v1580, %v1600
      %v1617 = vadd.f32 %v1581, %v1601
      %v1618 = vadd.f32 %v1582, %v1602
      %v1619 = vadd.f32 %v1583, %v1603
      %v1620 = vadd.f32 %v1584, %v1604
      %v1621 = vadd.f32 %v1585, %v1605
      %v1622 = vld [vmem:[#allocation2 + $0x2] sm:$0xff]
      %v1623 = vld [vmem:[#allocation2 + $0xa] sm:$0xff]
      %v1624 = vld [vmem:[#allocation2 + $0x1a] sm:$0xff]
      %v1625 = vld [vmem:[#allocation2 + $0x22] sm:$0xff]
      %v1626 = vld [vmem:[#allocation2 + $0x32] sm:$0xff]
      %v1627 = vld [vmem:[#allocation2 + $0x3a] sm:$0xff]
      %v1628 = vld [vmem:[#allocation2 + $0x4a] sm:$0xff]
      %v1629 = vld [vmem:[#allocation2 + $0x52] sm:$0xff]
      %v1630 = vld [vmem:[#allocation2 + $0x62] sm:$0xff]
      %v1631 = vld [vmem:[#allocation2 + $0x6a] sm:$0xff]
      %v1632 = vld [vmem:[#allocation2 + $0x7a] sm:$0xff]
      %v1633 = vld [vmem:[#allocation2 + $0x82] sm:$0xff]
      %v1634 = vld [vmem:[#allocation2 + $0x92] sm:$0xff]
      %v1635 = vld [vmem:[#allocation2 + $0x9a] sm:$0xff]
      %v1636 = vld [vmem:[#allocation2 + $0xaa] sm:$0xff]
      %v1637 = vld [vmem:[#allocation2 + $0xb2] sm:$0xff]
      %v1638 = vld [vmem:[#allocation2 + $0xc2] sm:$0xff]
      %v1639 = vld [vmem:[#allocation2 + $0xca] sm:$0xff]
      %v1640 = vld [vmem:[#allocation2 + $0xda] sm:$0xff]
      %v1641 = vld [vmem:[#allocation2 + $0xe2] sm:$0xff]
      %v1642 = vld [vmem:[#allocation2 + $0xf2] sm:$0xff]
      %v1643 = vld [vmem:[#allocation2 + $0xfa] sm:$0xff]
      %v1644 = vld [vmem:[#allocation2 + $0x10a] sm:$0xff]
      %v1645 = vld [vmem:[#allocation2 + $0x112] sm:$0xff]
      %v1646 = vlaneseq
      %v1647 = vshrl.u32 %v1646, 7
      %v1648 = vsub.s32 2, %v1647
      %v1649 = vrot.slane %v1210, %v1648
      %v1650 = vmul.f32 %v1622, %v1649
      %v1651 = vmul.f32 %v1623, %v1649
      %v1652 = vmul.f32 %v1624, %v1649
      %v1653 = vmul.f32 %v1625, %v1649
      %v1654 = vmul.f32 %v1626, %v1649
      %v1655 = vmul.f32 %v1627, %v1649
      %v1656 = vmul.f32 %v1628, %v1649
      %v1657 = vmul.f32 %v1629, %v1649
      %v1658 = vmul.f32 %v1630, %v1649
      %v1659 = vmul.f32 %v1631, %v1649
      %v1660 = vmul.f32 %v1632, %v1649
      %v1661 = vmul.f32 %v1633, %v1649
      %v1662 = vmul.f32 %v1634, %v1649
      %v1663 = vmul.f32 %v1635, %v1649
      %v1664 = vmul.f32 %v1636, %v1649
      %v1665 = vmul.f32 %v1637, %v1649
      %v1666 = vadd.f32 %v1606, %v1650
      %v1667 = vadd.f32 %v1607, %v1651
      %v1668 = vadd.f32 %v1608, %v1652
      %v1669 = vadd.f32 %v1609, %v1653
      %v1670 = vadd.f32 %v1610, %v1654
      %v1671 = vadd.f32 %v1611, %v1655
      %v1672 = vadd.f32 %v1612, %v1656
      %v1673 = vadd.f32 %v1613, %v1657
      %v1674 = vadd.f32 %v1614, %v1658
      %v1675 = vadd.f32 %v1615, %v1659
      %v1676 = vadd.f32 %v1616, %v1660
      %v1677 = vadd.f32 %v1617, %v1661
      %v1678 = vadd.f32 %v1618, %v1662
      %v1679 = vadd.f32 %v1619, %v1663
      %v1680 = vadd.f32 %v1620, %v1664
      %v1681 = vadd.f32 %v1621, %v1665
      %v1682 = vlaneseq
      %v1683 = vshrl.u32 %v1682, 7
      %v1684 = vsub.s32 7, %v1683
      %v1685 = vrot.slane %v1210, %v1684
      %v1686 = vmul.f32 %v1624, %v1685
      %v1687 = vmul.f32 %v1625, %v1685
      %v1688 = vmul.f32 %v1626, %v1685
      %v1689 = vmul.f32 %v1627, %v1685
      %v1690 = vmul.f32 %v1628, %v1685
      %v1691 = vmul.f32 %v1629, %v1685
      %v1692 = vmul.f32 %v1630, %v1685
      %v1693 = vmul.f32 %v1631, %v1685
      %v1694 = vmul.f32 %v1632, %v1685
      %v1695 = vmul.f32 %v1633, %v1685
      %v1696 = vmul.f32 %v1634, %v1685
      %v1697 = vmul.f32 %v1635, %v1685
      %v1698 = vmul.f32 %v1636, %v1685
      %v1699 = vmul.f32 %v1637, %v1685
      %v1700 = vmul.f32 %v1638, %v1685
      %v1701 = vmul.f32 %v1639, %v1685
      %v1702 = vadd.f32 %v1666, %v1686
      %v1703 = vadd.f32 %v1667, %v1687
      %v1704 = vadd.f32 %v1668, %v1688
      %v1705 = vadd.f32 %v1669, %v1689
      %v1706 = vadd.f32 %v1670, %v1690
      %v1707 = vadd.f32 %v1671, %v1691
      %v1708 = vadd.f32 %v1672, %v1692
      %v1709 = vadd.f32 %v1673, %v1693
      %v1710 = vadd.f32 %v1674, %v1694
      %v1711 = vadd.f32 %v1675, %v1695
      %v1712 = vadd.f32 %v1676, %v1696
      %v1713 = vadd.f32 %v1677, %v1697
      %v1714 = vadd.f32 %v1678, %v1698
      %v1715 = vadd.f32 %v1679, %v1699
      %v1716 = vadd.f32 %v1680, %v1700
      %v1717 = vadd.f32 %v1681, %v1701
      %v1718 = vlaneseq
      %v1719 = vshrl.u32 %v1718, 7
      %v1720 = vsub.s32 4, %v1719
      %v1721 = vrot.slane %v1211, %v1720
      %v1722 = vmul.f32 %v1626, %v1721
      %v1723 = vmul.f32 %v1627, %v1721
      %v1724 = vmul.f32 %v1628, %v1721
      %v1725 = vmul.f32 %v1629, %v1721
      %v1726 = vmul.f32 %v1630, %v1721
      %v1727 = vmul.f32 %v1631, %v1721
      %v1728 = vmul.f32 %v1632, %v1721
      %v1729 = vmul.f32 %v1633, %v1721
      %v1730 = vmul.f32 %v1634, %v1721
      %v1731 = vmul.f32 %v1635, %v1721
      %v1732 = vmul.f32 %v1636, %v1721
      %v1733 = vmul.f32 %v1637, %v1721
      %v1734 = vmul.f32 %v1638, %v1721
      %v1735 = vmul.f32 %v1639, %v1721
      %v1736 = vmul.f32 %v1640, %v1721
      %v1737 = vmul.f32 %v1641, %v1721
      %v1738 = vadd.f32 %v1702, %v1722
      %v1739 = vadd.f32 %v1703, %v1723
      %v1740 = vadd.f32 %v1704, %v1724
      %v1741 = vadd.f32 %v1705, %v1725
      %v1742 = vadd.f32 %v1706, %v1726
      %v1743 = vadd.f32 %v1707, %v1727
      %v1744 = vadd.f32 %v1708, %v1728
      %v1745 = vadd.f32 %v1709, %v1729
      %v1746 = vadd.f32 %v1710, %v1730
      %v1747 = vadd.f32 %v1711, %v1731
      %v1748 = vadd.f32 %v1712, %v1732
      %v1749 = vadd.f32 %v1713, %v1733
      %v1750 = vadd.f32 %v1714, %v1734
      %v1751 = vadd.f32 %v1715, %v1735
      %v1752 = vadd.f32 %v1716, %v1736
      %v1753 = vadd.f32 %v1717, %v1737
      %v1754 = vlaneseq
      %v1755 = vshrl.u32 %v1754, 7
      %v1756 = vsub.s32 1, %v1755
      %v1757 = vrot.slane %v1212, %v1756
      %v1758 = vmul.f32 %v1628, %v1757
      %v1759 = vmul.f32 %v1629, %v1757
      %v1760 = vmul.f32 %v1630, %v1757
      %v1761 = vmul.f32 %v1631, %v1757
      %v1762 = vmul.f32 %v1632, %v1757
      %v1763 = vmul.f32 %v1633, %v1757
      %v1764 = vmul.f32 %v1634, %v1757
      %v1765 = vmul.f32 %v1635, %v1757
      %v1766 = vmul.f32 %v1636, %v1757
      %v1767 = vmul.f32 %v1637, %v1757
      %v1768 = vmul.f32 %v1638, %v1757
      %v1769 = vmul.f32 %v1639, %v1757
      %v1770 = vmul.f32 %v1640, %v1757
      %v1771 = vmul.f32 %v1641, %v1757
      %v1772 = vmul.f32 %v1642, %v1757
      %v1773 = vmul.f32 %v1643, %v1757
      %v1774 = vadd.f32 %v1738, %v1758
      %v1775 = vadd.f32 %v1739, %v1759
      %v1776 = vadd.f32 %v1740, %v1760
      %v1777 = vadd.f32 %v1741, %v1761
      %v1778 = vadd.f32 %v1742, %v1762
      %v1779 = vadd.f32 %v1743, %v1763
      %v1780 = vadd.f32 %v1744, %v1764
      %v1781 = vadd.f32 %v1745, %v1765
      %v1782 = vadd.f32 %v1746, %v1766
      %v1783 = vadd.f32 %v1747, %v1767
      %v1784 = vadd.f32 %v1748, %v1768
      %v1785 = vadd.f32 %v1749, %v1769
      %v1786 = vadd.f32 %v1750, %v1770
      %v1787 = vadd.f32 %v1751, %v1771
      %v1788 = vadd.f32 %v1752, %v1772
      %v1789 = vadd.f32 %v1753, %v1773
      %v1790 = vlaneseq
      %v1791 = vshrl.u32 %v1790, 7
      %v1792 = vsub.s32 6, %v1791
      %v1793 = vrot.slane %v1212, %v1792
      %v1794 = vmul.f32 %v1630, %v1793
      %v1795 = vmul.f32 %v1631, %v1793
      %v1796 = vmul.f32 %v1632, %v1793
      %v1797 = vmul.f32 %v1633, %v1793
      %v1798 = vmul.f32 %v1634, %v1793
      %v1799 = vmul.f32 %v1635, %v1793
      %v1800 = vmul.f32 %v1636, %v1793
      %v1801 = vmul.f32 %v1637, %v1793
      %v1802 = vmul.f32 %v1638, %v1793
      %v1803 = vmul.f32 %v1639, %v1793
      %v1804 = vmul.f32 %v1640, %v1793
      %v1805 = vmul.f32 %v1641, %v1793
      %v1806 = vmul.f32 %v1642, %v1793
      %v1807 = vmul.f32 %v1643, %v1793
      %v1808 = vmul.f32 %v1644, %v1793
      %v1809 = vmul.f32 %v1645, %v1793
      %v1810 = vadd.f32 %v1774, %v1794
      %v1811 = vadd.f32 %v1775, %v1795
      %v1812 = vadd.f32 %v1776, %v1796
      %v1813 = vadd.f32 %v1777, %v1797
      %v1814 = vadd.f32 %v1778, %v1798
      %v1815 = vadd.f32 %v1779, %v1799
      %v1816 = vadd.f32 %v1780, %v1800
      %v1817 = vadd.f32 %v1781, %v1801
      %v1818 = vadd.f32 %v1782, %v1802
      %v1819 = vadd.f32 %v1783, %v1803
      %v1820 = vadd.f32 %v1784, %v1804
      %v1821 = vadd.f32 %v1785, %v1805
      %v1822 = vadd.f32 %v1786, %v1806
      %v1823 = vadd.f32 %v1787, %v1807
      %v1824 = vadd.f32 %v1788, %v1808
      %v1825 = vadd.f32 %v1789, %v1809
      %v1826 = vld [vmem:[#allocation2 + $0x3] sm:$0xff]
      %v1827 = vld [vmem:[#allocation2 + $0xb] sm:$0xff]
      %v1828 = vld [vmem:[#allocation2 + $0x1b] sm:$0xff]
      %v1829 = vld [vmem:[#allocation2 + $0x23] sm:$0xff]
      %v1830 = vld [vmem:[#allocation2 + $0x33] sm:$0xff]
      %v1831 = vld [vmem:[#allocation2 + $0x3b] sm:$0xff]
      %v1832 = vld [vmem:[#allocation2 + $0x4b] sm:$0xff]
      %v1833 = vld [vmem:[#allocation2 + $0x53] sm:$0xff]
      %v1834 = vld [vmem:[#allocation2 + $0x63] sm:$0xff]
      %v1835 = vld [vmem:[#allocation2 + $0x6b] sm:$0xff]
      %v1836 = vld [vmem:[#allocation2 + $0x7b] sm:$0xff]
      %v1837 = vld [vmem:[#allocation2 + $0x83] sm:$0xff]
      %v1838 = vld [vmem:[#allocation2 + $0x93] sm:$0xff]
      %v1839 = vld [vmem:[#allocation2 + $0x9b] sm:$0xff]
      %v1840 = vld [vmem:[#allocation2 + $0xab] sm:$0xff]
      %v1841 = vld [vmem:[#allocation2 + $0xb3] sm:$0xff]
      %v1842 = vld [vmem:[#allocation2 + $0xc3] sm:$0xff]
      %v1843 = vld [vmem:[#allocation2 + $0xcb] sm:$0xff]
      %v1844 = vld [vmem:[#allocation2 + $0xdb] sm:$0xff]
      %v1845 = vld [vmem:[#allocation2 + $0xe3] sm:$0xff]
      %v1846 = vld [vmem:[#allocation2 + $0xf3] sm:$0xff]
      %v1847 = vld [vmem:[#allocation2 + $0xfb] sm:$0xff]
      %v1848 = vld [vmem:[#allocation2 + $0x10b] sm:$0xff]
      %v1849 = vld [vmem:[#allocation2 + $0x113] sm:$0xff]
      %v1850 = vlaneseq
      %v1851 = vshrl.u32 %v1850, 7
      %v1852 = vsub.s32 3, %v1851
      %v1853 = vrot.slane %v1210, %v1852
      %v1854 = vmul.f32 %v1826, %v1853
      %v1855 = vmul.f32 %v1827, %v1853
      %v1856 = vmul.f32 %v1828, %v1853
      %v1857 = vmul.f32 %v1829, %v1853
      %v1858 = vmul.f32 %v1830, %v1853
      %v1859 = vmul.f32 %v1831, %v1853
      %v1860 = vmul.f32 %v1832, %v1853
      %v1861 = vmul.f32 %v1833, %v1853
      %v1862 = vmul.f32 %v1834, %v1853
      %v1863 = vmul.f32 %v1835, %v1853
      %v1864 = vmul.f32 %v1836, %v1853
      %v1865 = vmul.f32 %v1837, %v1853
      %v1866 = vmul.f32 %v1838, %v1853
      %v1867 = vmul.f32 %v1839, %v1853
      %v1868 = vmul.f32 %v1840, %v1853
      %v1869 = vmul.f32 %v1841, %v1853
      %v1870 = vadd.f32 %v1810, %v1854
      %v1871 = vadd.f32 %v1811, %v1855
      %v1872 = vadd.f32 %v1812, %v1856
      %v1873 = vadd.f32 %v1813, %v1857
      %v1874 = vadd.f32 %v1814, %v1858
      %v1875 = vadd.f32 %v1815, %v1859
      %v1876 = vadd.f32 %v1816, %v1860
      %v1877 = vadd.f32 %v1817, %v1861
      %v1878 = vadd.f32 %v1818, %v1862
      %v1879 = vadd.f32 %v1819, %v1863
      %v1880 = vadd.f32 %v1820, %v1864
      %v1881 = vadd.f32 %v1821, %v1865
      %v1882 = vadd.f32 %v1822, %v1866
      %v1883 = vadd.f32 %v1823, %v1867
      %v1884 = vadd.f32 %v1824, %v1868
      %v1885 = vadd.f32 %v1825, %v1869
      %v1886 = vlaneseq
      %v1887 = vshrl.u32 %v1886, 7
      %v1888 = vsub.s32 0, %v1887
      %v1889 = vrot.slane %v1211, %v1888
      %v1890 = vmul.f32 %v1828, %v1889
      %v1891 = vmul.f32 %v1829, %v1889
      %v1892 = vmul.f32 %v1830, %v1889
      %v1893 = vmul.f32 %v1831, %v1889
      %v1894 = vmul.f32 %v1832, %v1889
      %v1895 = vmul.f32 %v1833, %v1889
      %v1896 = vmul.f32 %v1834, %v1889
      %v1897 = vmul.f32 %v1835, %v1889
      %v1898 = vmul.f32 %v1836, %v1889
      %v1899 = vmul.f32 %v1837, %v1889
      %v1900 = vmul.f32 %v1838, %v1889
      %v1901 = vmul.f32 %v1839, %v1889
      %v1902 = vmul.f32 %v1840, %v1889
      %v1903 = vmul.f32 %v1841, %v1889
      %v1904 = vmul.f32 %v1842, %v1889
      %v1905 = vmul.f32 %v1843, %v1889
      %v1906 = vadd.f32 %v1870, %v1890
      %v1907 = vadd.f32 %v1871, %v1891
      %v1908 = vadd.f32 %v1872, %v1892
      %v1909 = vadd.f32 %v1873, %v1893
      %v1910 = vadd.f32 %v1874, %v1894
      %v1911 = vadd.f32 %v1875, %v1895
      %v1912 = vadd.f32 %v1876, %v1896
      %v1913 = vadd.f32 %v1877, %v1897
      %v1914 = vadd.f32 %v1878, %v1898
      %v1915 = vadd.f32 %v1879, %v1899
      %v1916 = vadd.f32 %v1880, %v1900
      %v1917 = vadd.f32 %v1881, %v1901
      %v1918 = vadd.f32 %v1882, %v1902
      %v1919 = vadd.f32 %v1883, %v1903
      %v1920 = vadd.f32 %v1884, %v1904
      %v1921 = vadd.f32 %v1885, %v1905
      %v1922 = vlaneseq
      %v1923 = vshrl.u32 %v1922, 7
      %v1924 = vsub.s32 5, %v1923
      %v1925 = vrot.slane %v1211, %v1924
      %v1926 = vmul.f32 %v1830, %v1925
      %v1927 = vmul.f32 %v1831, %v1925
      %v1928 = vmul.f32 %v1832, %v1925
      %v1929 = vmul.f32 %v1833, %v1925
      %v1930 = vmul.f32 %v1834, %v1925
      %v1931 = vmul.f32 %v1835, %v1925
      %v1932 = vmul.f32 %v1836, %v1925
      %v1933 = vmul.f32 %v1837, %v1925
      %v1934 = vmul.f32 %v1838, %v1925
      %v1935 = vmul.f32 %v1839, %v1925
      %v1936 = vmul.f32 %v1840, %v1925
      %v1937 = vmul.f32 %v1841, %v1925
      %v1938 = vmul.f32 %v1842, %v1925
      %v1939 = vmul.f32 %v1843, %v1925
      %v1940 = vmul.f32 %v1844, %v1925
      %v1941 = vmul.f32 %v1845, %v1925
      %v1942 = vadd.f32 %v1906, %v1926
      %v1943 = vadd.f32 %v1907, %v1927
      %v1944 = vadd.f32 %v1908, %v1928
      %v1945 = vadd.f32 %v1909, %v1929
      %v1946 = vadd.f32 %v1910, %v1930
      %v1947 = vadd.f32 %v1911, %v1931
      %v1948 = vadd.f32 %v1912, %v1932
      %v1949 = vadd.f32 %v1913, %v1933
      %v1950 = vadd.f32 %v1914, %v1934
      %v1951 = vadd.f32 %v1915, %v1935
      %v1952 = vadd.f32 %v1916, %v1936
      %v1953 = vadd.f32 %v1917, %v1937
      %v1954 = vadd.f32 %v1918, %v1938
      %v1955 = vadd.f32 %v1919, %v1939
      %v1956 = vadd.f32 %v1920, %v1940
      %v1957 = vadd.f32 %v1921, %v1941
      %v1958 = vlaneseq
      %v1959 = vshrl.u32 %v1958, 7
      %v1960 = vsub.s32 2, %v1959
      %v1961 = vrot.slane %v1212, %v1960
      %v1962 = vmul.f32 %v1832, %v1961
      %v1963 = vmul.f32 %v1833, %v1961
      %v1964 = vmul.f32 %v1834, %v1961
      %v1965 = vmul.f32 %v1835, %v1961
      %v1966 = vmul.f32 %v1836, %v1961
      %v1967 = vmul.f32 %v1837, %v1961
      %v1968 = vmul.f32 %v1838, %v1961
      %v1969 = vmul.f32 %v1839, %v1961
      %v1970 = vmul.f32 %v1840, %v1961
      %v1971 = vmul.f32 %v1841, %v1961
      %v1972 = vmul.f32 %v1842, %v1961
      %v1973 = vmul.f32 %v1843, %v1961
      %v1974 = vmul.f32 %v1844, %v1961
      %v1975 = vmul.f32 %v1845, %v1961
      %v1976 = vmul.f32 %v1846, %v1961
      %v1977 = vmul.f32 %v1847, %v1961
      %v1978 = vadd.f32 %v1942, %v1962
      %v1979 = vadd.f32 %v1943, %v1963
      %v1980 = vadd.f32 %v1944, %v1964
      %v1981 = vadd.f32 %v1945, %v1965
      %v1982 = vadd.f32 %v1946, %v1966
      %v1983 = vadd.f32 %v1947, %v1967
      %v1984 = vadd.f32 %v1948, %v1968
      %v1985 = vadd.f32 %v1949, %v1969
      %v1986 = vadd.f32 %v1950, %v1970
      %v1987 = vadd.f32 %v1951, %v1971
      %v1988 = vadd.f32 %v1952, %v1972
      %v1989 = vadd.f32 %v1953, %v1973
      %v1990 = vadd.f32 %v1954, %v1974
      %v1991 = vadd.f32 %v1955, %v1975
      %v1992 = vadd.f32 %v1956, %v1976
      %v1993 = vadd.f32 %v1957, %v1977
      %v1994 = vlaneseq
      %v1995 = vshrl.u32 %v1994, 7
      %v1996 = vsub.s32 7, %v1995
      %v1997 = vrot.slane %v1212, %v1996
      %v1998 = vmul.f32 %v1834, %v1997
      %v1999 = vmul.f32 %v1835, %v1997
      %v2000 = vmul.f32 %v1836, %v1997
      %v2001 = vmul.f32 %v1837, %v1997
      %v2002 = vmul.f32 %v1838, %v1997
      %v2003 = vmul.f32 %v1839, %v1997
      %v2004 = vmul.f32 %v1840, %v1997
      %v2005 = vmul.f32 %v1841, %v1997
      %v2006 = vmul.f32 %v1842, %v1997
      %v2007 = vmul.f32 %v1843, %v1997
      %v2008 = vmul.f32 %v1844, %v1997
      %v2009 = vmul.f32 %v1845, %v1997
      %v2010 = vmul.f32 %v1846, %v1997
      %v2011 = vmul.f32 %v1847, %v1997
      %v2012 = vmul.f32 %v1848, %v1997
      %v2013 = vmul.f32 %v1849, %v1997
      %v2014 = vadd.f32 %v1978, %v1998
      %v2015 = vadd.f32 %v1979, %v1999
      %v2016 = vadd.f32 %v1980, %v2000
      %v2017 = vadd.f32 %v1981, %v2001
      %v2018 = vadd.f32 %v1982, %v2002
      %v2019 = vadd.f32 %v1983, %v2003
      %v2020 = vadd.f32 %v1984, %v2004
      %v2021 = vadd.f32 %v1985, %v2005
      %v2022 = vadd.f32 %v1986, %v2006
      %v2023 = vadd.f32 %v1987, %v2007
      %v2024 = vadd.f32 %v1988, %v2008
      %v2025 = vadd.f32 %v1989, %v2009
      %v2026 = vadd.f32 %v1990, %v2010
      %v2027 = vadd.f32 %v1991, %v2011
      %v2028 = vadd.f32 %v1992, %v2012
      %v2029 = vadd.f32 %v1993, %v2013
      %v2030 = vld [vmem:[#allocation2 + $0x4] sm:$0xff]
      %v2031 = vld [vmem:[#allocation2 + $0xc] sm:$0xff]
      %v2032 = vld [vmem:[#allocation2 + $0x1c] sm:$0xff]
      %v2033 = vld [vmem:[#allocation2 + $0x24] sm:$0xff]
      %v2034 = vld [vmem:[#allocation2 + $0x34] sm:$0xff]
      %v2035 = vld [vmem:[#allocation2 + $0x3c] sm:$0xff]
      %v2036 = vld [vmem:[#allocation2 + $0x4c] sm:$0xff]
      %v2037 = vld [vmem:[#allocation2 + $0x54] sm:$0xff]
      %v2038 = vld [vmem:[#allocation2 + $0x64] sm:$0xff]
      %v2039 = vld [vmem:[#allocation2 + $0x6c] sm:$0xff]
      %v2040 = vld [vmem:[#allocation2 + $0x7c] sm:$0xff]
      %v2041 = vld [vmem:[#allocation2 + $0x84] sm:$0xff]
      %v2042 = vld [vmem:[#allocation2 + $0x94] sm:$0xff]
      %v2043 = vld [vmem:[#allocation2 + $0x9c] sm:$0xff]
      %v2044 = vld [vmem:[#allocation2 + $0xac] sm:$0xff]
      %v2045 = vld [vmem:[#allocation2 + $0xb4] sm:$0xff]
      %v2046 = vld [vmem:[#allocation2 + $0xc4] sm:$0xff]
      %v2047 = vld [vmem:[#allocation2 + $0xcc] sm:$0xff]
      %v2048 = vld [vmem:[#allocation2 + $0xdc] sm:$0xff]
      %v2049 = vld [vmem:[#allocation2 + $0xe4] sm:$0xff]
      %v2050 = vld [vmem:[#allocation2 + $0xf4] sm:$0xff]
      %v2051 = vld [vmem:[#allocation2 + $0xfc] sm:$0xff]
      %v2052 = vld [vmem:[#allocation2 + $0x10c] sm:$0xff]
      %v2053 = vld [vmem:[#allocation2 + $0x114] sm:$0xff]
      %v2054 = vlaneseq
      %v2055 = vshrl.u32 %v2054, 7
      %v2056 = vsub.s32 4, %v2055
      %v2057 = vrot.slane %v1210, %v2056
      %v2058 = vmul.f32 %v2030, %v2057
      %v2059 = vmul.f32 %v2031, %v2057
      %v2060 = vmul.f32 %v2032, %v2057
      %v2061 = vmul.f32 %v2033, %v2057
      %v2062 = vmul.f32 %v2034, %v2057
      %v2063 = vmul.f32 %v2035, %v2057
      %v2064 = vmul.f32 %v2036, %v2057
      %v2065 = vmul.f32 %v2037, %v2057
      %v2066 = vmul.f32 %v2038, %v2057
      %v2067 = vmul.f32 %v2039, %v2057
      %v2068 = vmul.f32 %v2040, %v2057
      %v2069 = vmul.f32 %v2041, %v2057
      %v2070 = vmul.f32 %v2042, %v2057
      %v2071 = vmul.f32 %v2043, %v2057
      %v2072 = vmul.f32 %v2044, %v2057
      %v2073 = vmul.f32 %v2045, %v2057
      %v2074 = vadd.f32 %v2014, %v2058
      %v2075 = vadd.f32 %v2015, %v2059
      %v2076 = vadd.f32 %v2016, %v2060
      %v2077 = vadd.f32 %v2017, %v2061
      %v2078 = vadd.f32 %v2018, %v2062
      %v2079 = vadd.f32 %v2019, %v2063
      %v2080 = vadd.f32 %v2020, %v2064
      %v2081 = vadd.f32 %v2021, %v2065
      %v2082 = vadd.f32 %v2022, %v2066
      %v2083 = vadd.f32 %v2023, %v2067
      %v2084 = vadd.f32 %v2024, %v2068
      %v2085 = vadd.f32 %v2025, %v2069
      %v2086 = vadd.f32 %v2026, %v2070
      %v2087 = vadd.f32 %v2027, %v2071
      %v2088 = vadd.f32 %v2028, %v2072
      %v2089 = vadd.f32 %v2029, %v2073
      %v2090 = vlaneseq
      %v2091 = vshrl.u32 %v2090, 7
      %v2092 = vsub.s32 1, %v2091
      %v2093 = vrot.slane %v1211, %v2092
      %v2094 = vmul.f32 %v2032, %v2093
      %v2095 = vmul.f32 %v2033, %v2093
      %v2096 = vmul.f32 %v2034, %v2093
      %v2097 = vmul.f32 %v2035, %v2093
      %v2098 = vmul.f32 %v2036, %v2093
      %v2099 = vmul.f32 %v2037, %v2093
      %v2100 = vmul.f32 %v2038, %v2093
      %v2101 = vmul.f32 %v2039, %v2093
      %v2102 = vmul.f32 %v2040, %v2093
      %v2103 = vmul.f32 %v2041, %v2093
      %v2104 = vmul.f32 %v2042, %v2093
      %v2105 = vmul.f32 %v2043, %v2093
      %v2106 = vmul.f32 %v2044, %v2093
      %v2107 = vmul.f32 %v2045, %v2093
      %v2108 = vmul.f32 %v2046, %v2093
      %v2109 = vmul.f32 %v2047, %v2093
      %v2110 = vadd.f32 %v2074, %v2094
      %v2111 = vadd.f32 %v2075, %v2095
      %v2112 = vadd.f32 %v2076, %v2096
      %v2113 = vadd.f32 %v2077, %v2097
      %v2114 = vadd.f32 %v2078, %v2098
      %v2115 = vadd.f32 %v2079, %v2099
      %v2116 = vadd.f32 %v2080, %v2100
      %v2117 = vadd.f32 %v2081, %v2101
      %v2118 = vadd.f32 %v2082, %v2102
      %v2119 = vadd.f32 %v2083, %v2103
      %v2120 = vadd.f32 %v2084, %v2104
      %v2121 = vadd.f32 %v2085, %v2105
      %v2122 = vadd.f32 %v2086, %v2106
      %v2123 = vadd.f32 %v2087, %v2107
      %v2124 = vadd.f32 %v2088, %v2108
      %v2125 = vadd.f32 %v2089, %v2109
      %v2126 = vlaneseq
      %v2127 = vshrl.u32 %v2126, 7
      %v2128 = vsub.s32 6, %v2127
      %v2129 = vrot.slane %v1211, %v2128
      %v2130 = vmul.f32 %v2034, %v2129
      %v2131 = vmul.f32 %v2035, %v2129
      %v2132 = vmul.f32 %v2036, %v2129
      %v2133 = vmul.f32 %v2037, %v2129
      %v2134 = vmul.f32 %v2038, %v2129
      %v2135 = vmul.f32 %v2039, %v2129
      %v2136 = vmul.f32 %v2040, %v2129
      %v2137 = vmul.f32 %v2041, %v2129
      %v2138 = vmul.f32 %v2042, %v2129
      %v2139 = vmul.f32 %v2043, %v2129
      %v2140 = vmul.f32 %v2044, %v2129
      %v2141 = vmul.f32 %v2045, %v2129
      %v2142 = vmul.f32 %v2046, %v2129
      %v2143 = vmul.f32 %v2047, %v2129
      %v2144 = vmul.f32 %v2048, %v2129
      %v2145 = vmul.f32 %v2049, %v2129
      %v2146 = vadd.f32 %v2110, %v2130
      %v2147 = vadd.f32 %v2111, %v2131
      %v2148 = vadd.f32 %v2112, %v2132
      %v2149 = vadd.f32 %v2113, %v2133
      %v2150 = vadd.f32 %v2114, %v2134
      %v2151 = vadd.f32 %v2115, %v2135
      %v2152 = vadd.f32 %v2116, %v2136
      %v2153 = vadd.f32 %v2117, %v2137
      %v2154 = vadd.f32 %v2118, %v2138
      %v2155 = vadd.f32 %v2119, %v2139
      %v2156 = vadd.f32 %v2120, %v2140
      %v2157 = vadd.f32 %v2121, %v2141
      %v2158 = vadd.f32 %v2122, %v2142
      %v2159 = vadd.f32 %v2123, %v2143
      %v2160 = vadd.f32 %v2124, %v2144
      %v2161 = vadd.f32 %v2125, %v2145
      %v2162 = vlaneseq
      %v2163 = vshrl.u32 %v2162, 7
      %v2164 = vsub.s32 3, %v2163
      %v2165 = vrot.slane %v1212, %v2164
      %v2166 = vmul.f32 %v2036, %v2165
      %v2167 = vmul.f32 %v2037, %v2165
      %v2168 = vmul.f32 %v2038, %v2165
      %v2169 = vmul.f32 %v2039, %v2165
      %v2170 = vmul.f32 %v2040, %v2165
      %v2171 = vmul.f32 %v2041, %v2165
      %v2172 = vmul.f32 %v2042, %v2165
      %v2173 = vmul.f32 %v2043, %v2165
      %v2174 = vmul.f32 %v2044, %v2165
      %v2175 = vmul.f32 %v2045, %v2165
      %v2176 = vmul.f32 %v2046, %v2165
      %v2177 = vmul.f32 %v2047, %v2165
      %v2178 = vmul.f32 %v2048, %v2165
      %v2179 = vmul.f32 %v2049, %v2165
      %v2180 = vmul.f32 %v2050, %v2165
      %v2181 = vmul.f32 %v2051, %v2165
      %v2182 = vadd.f32 %v2146, %v2166
      %v2183 = vadd.f32 %v2147, %v2167
      %v2184 = vadd.f32 %v2148, %v2168
      %v2185 = vadd.f32 %v2149, %v2169
      %v2186 = vadd.f32 %v2150, %v2170
      %v2187 = vadd.f32 %v2151, %v2171
      %v2188 = vadd.f32 %v2152, %v2172
      %v2189 = vadd.f32 %v2153, %v2173
      %v2190 = vadd.f32 %v2154, %v2174
      %v2191 = vadd.f32 %v2155, %v2175
      %v2192 = vadd.f32 %v2156, %v2176
      %v2193 = vadd.f32 %v2157, %v2177
      %v2194 = vadd.f32 %v2158, %v2178
      %v2195 = vadd.f32 %v2159, %v2179
      %v2196 = vadd.f32 %v2160, %v2180
      %v2197 = vadd.f32 %v2161, %v2181
      %v2198 = vlaneseq
      %v2199 = vshrl.u32 %v2198, 7
      %v2200 = vsub.s32 0, %v2199
      %v2201 = vrot.slane %v1213, %v2200
      %v2202 = vmul.f32 %v2038, %v2201
      %v2203 = vmul.f32 %v2039, %v2201
      %v2204 = vmul.f32 %v2040, %v2201
      %v2205 = vmul.f32 %v2041, %v2201
      %v2206 = vmul.f32 %v2042, %v2201
      %v2207 = vmul.f32 %v2043, %v2201
      %v2208 = vmul.f32 %v2044, %v2201
      %v2209 = vmul.f32 %v2045, %v2201
      %v2210 = vmul.f32 %v2046, %v2201
      %v2211 = vmul.f32 %v2047, %v2201
      %v2212 = vmul.f32 %v2048, %v2201
      %v2213 = vmul.f32 %v2049, %v2201
      %v2214 = vmul.f32 %v2050, %v2201
      %v2215 = vmul.f32 %v2051, %v2201
      %v2216 = vmul.f32 %v2052, %v2201
      %v2217 = vmul.f32 %v2053, %v2201
      %v2218 = vadd.f32 %v2182, %v2202
      %v2219 = vadd.f32 %v2183, %v2203
      %v2220 = vadd.f32 %v2184, %v2204
      %v2221 = vadd.f32 %v2185, %v2205
      %v2222 = vadd.f32 %v2186, %v2206
      %v2223 = vadd.f32 %v2187, %v2207
      %v2224 = vadd.f32 %v2188, %v2208
      %v2225 = vadd.f32 %v2189, %v2209
      %v2226 = vadd.f32 %v2190, %v2210
      %v2227 = vadd.f32 %v2191, %v2211
      %v2228 = vadd.f32 %v2192, %v2212
      %v2229 = vadd.f32 %v2193, %v2213
      %v2230 = vadd.f32 %v2194, %v2214
      %v2231 = vadd.f32 %v2195, %v2215
      %v2232 = vadd.f32 %v2196, %v2216
      %v2233 = vadd.f32 %v2197, %v2217
      %v2234 = vld [vmem:[%s5] sm:$0x1]
      %v2236 = vlaneseq
      %v2237 = vshrl.u32 %v2236, 7
      %v2238 = vsub.s32 0, %v2237
      %v2239 = vrot.slane %v2234, %v2238
      %v2241 = vadd.f32 %v2218, %v2239
      %v2242 = vadd.f32 %v2219, %v2239
      %v2243 = vadd.f32 %v2220, %v2239
      %v2244 = vadd.f32 %v2221, %v2239
      %v2245 = vadd.f32 %v2222, %v2239
      %v2246 = vadd.f32 %v2223, %v2239
      %v2247 = vadd.f32 %v2224, %v2239
      %v2248 = vadd.f32 %v2225, %v2239
      %v2249 = vadd.f32 %v2226, %v2239
      %v2250 = vadd.f32 %v2227, %v2239
      %v2251 = vadd.f32 %v2228, %v2239
      %v2252 = vadd.f32 %v2229, %v2239
      %v2253 = vadd.f32 %v2230, %v2239
      %v2254 = vadd.f32 %v2231, %v2239
      %v2255 = vadd.f32 %v2232, %v2239
      %v2256 = vadd.f32 %v2233, %v2239
      %v2257 = vxor.u32 %v2241, 2147483648
      %v2258 = vxor.u32 %v2242, 2147483648
      %v2259 = vxor.u32 %v2243, 2147483648
      %v2260 = vxor.u32 %v2244, 2147483648
      %v2261 = vxor.u32 %v2245, 2147483648
      %v2262 = vxor.u32 %v2246, 2147483648
      %v2263 = vxor.u32 %v2247, 2147483648
      %v2264 = vxor.u32 %v2248, 2147483648
      %v2265 = vxor.u32 %v2249, 2147483648
      %v2266 = vxor.u32 %v2250, 2147483648
      %v2267 = vxor.u32 %v2251, 2147483648
      %v2268 = vxor.u32 %v2252, 2147483648
      %v2269 = vxor.u32 %v2253, 2147483648
      %v2270 = vxor.u32 %v2254, 2147483648
      %v2271 = vxor.u32 %v2255, 2147483648
      %v2272 = vxor.u32 %v2256, 2147483648
      %v2273 = vmul.f32 %v2257, 1.442695
      %v2274 = vpow.pop %v2273
      %v2275 = vmul.f32 %v2258, 1.442695
      %v2276 = vpow.pop %v2275
      %v2277 = vmul.f32 %v2259, 1.442695
      %v2278 = vpow.pop %v2277
      %v2279 = vmul.f32 %v2260, 1.442695
      %v2280 = vpow.pop %v2279
      %v2281 = vmul.f32 %v2261, 1.442695
      %v2282 = vpow.pop %v2281
      %v2283 = vmul.f32 %v2262, 1.442695
      %v2284 = vpow.pop %v2283
      %v2285 = vmul.f32 %v2263, 1.442695
      %v2286 = vpow.pop %v2285
      %v2287 = vmul.f32 %v2264, 1.442695
      %v2288 = vpow.pop %v2287
      %v2289 = vmul.f32 %v2265, 1.442695
      %v2290 = vpow.pop %v2289
      %v2291 = vmul.f32 %v2266, 1.442695
      %v2292 = vpow.pop %v2291
      %v2293 = vmul.f32 %v2267, 1.442695
      %v2294 = vpow.pop %v2293
      %v2295 = vmul.f32 %v2268, 1.442695
      %v2296 = vpow.pop %v2295
      %v2297 = vmul.f32 %v2269, 1.442695
      %v2298 = vpow.pop %v2297
      %v2299 = vmul.f32 %v2270, 1.442695
      %v2300 = vpow.pop %v2299
      %v2301 = vmul.f32 %v2271, 1.442695
      %v2302 = vpow.pop %v2301
      %v2303 = vmul.f32 %v2272, 1.442695
      %v2304 = vpow.pop %v2303
      %v2305 = vadd.f32 %v2274, 1.0
      %v2306 = vadd.f32 %v2276, 1.0
      %v2307 = vadd.f32 %v2278, 1.0
      %v2308 = vadd.f32 %v2280, 1.0
      %v2309 = vadd.f32 %v2282, 1.0
      %v2310 = vadd.f32 %v2284, 1.0
      %v2311 = vadd.f32 %v2286, 1.0
      %v2312 = vadd.f32 %v2288, 1.0
      %v2313 = vadd.f32 %v2290, 1.0
      %v2314 = vadd.f32 %v2292, 1.0
      %v2315 = vadd.f32 %v2294, 1.0
      %v2316 = vadd.f32 %v2296, 1.0
      %v2317 = vadd.f32 %v2298, 1.0
      %v2318 = vadd.f32 %v2300, 1.0
      %v2319 = vadd.f32 %v2302, 1.0
      %v2320 = vadd.f32 %v2304, 1.0
      %v2321 = vrcp.pop %v2305
      %v2322 = vmul.f32 1.0, %v2321
      %v2323 = vrcp.pop %v2306
      %v2324 = vmul.f32 1.0, %v2323
      %v2325 = vrcp.pop %v2307
      %v2326 = vmul.f32 1.0, %v2325
      %v2327 = vrcp.pop %v2308
      %v2328 = vmul.f32 1.0, %v2327
      %v2329 = vrcp.pop %v2309
      %v2330 = vmul.f32 1.0, %v2329
      %v2331 = vrcp.pop %v2310
      %v2332 = vmul.f32 1.0, %v2331
      %v2333 = vrcp.pop %v2311
      %v2334 = vmul.f32 1.0, %v2333
      %v2335 = vrcp.pop %v2312
      %v2336 = vmul.f32 1.0, %v2335
      %v2337 = vrcp.pop %v2313
      %v2338 = vmul.f32 1.0, %v2337
      %v2339 = vrcp.pop %v2314
      %v2340 = vmul.f32 1.0, %v2339
      %v2341 = vrcp.pop %v2315
      %v2342 = vmul.f32 1.0, %v2341
      %v2343 = vrcp.pop %v2316
      %v2344 = vmul.f32 1.0, %v2343
      %v2345 = vrcp.pop %v2317
      %v2346 = vmul.f32 1.0, %v2345
      %v2347 = vrcp.pop %v2318
      %v2348 = vmul.f32 1.0, %v2347
      %v2349 = vrcp.pop %v2319
      %v2350 = vmul.f32 1.0, %v2349
      %v2351 = vrcp.pop %v2320
      %v2352 = vmul.f32 1.0, %v2351
      %v2353 = vmul.f32 %v2241, %v2322
      %v2354 = vmul.f32 %v2242, %v2324
      %v2355 = vmul.f32 %v2243, %v2326
      %v2356 = vmul.f32 %v2244, %v2328
      %v2357 = vmul.f32 %v2245, %v2330
      %v2358 = vmul.f32 %v2246, %v2332
      %v2359 = vmul.f32 %v2247, %v2334
      %v2360 = vmul.f32 %v2248, %v2336
      %v2361 = vmul.f32 %v2249, %v2338
      %v2362 = vmul.f32 %v2250, %v2340
      %v2363 = vmul.f32 %v2251, %v2342
      %v2364 = vmul.f32 %v2252, %v2344
      %v2365 = vmul.f32 %v2253, %v2346
      %v2366 = vmul.f32 %v2254, %v2348
      %v2367 = vmul.f32 %v2255, %v2350
      %v2368 = vmul.f32 %v2256, %v2352
      %s2369 = scalar_lea.vmem [#allocation2], 48
      %v2370 = vld [vmem:[%s2369 + $0x2] sm:$0xff]
      %v2371 = vld [vmem:[%s2369 + $0xa] sm:$0xff]
      %v2372 = vld [vmem:[%s2369 + $0x1a] sm:$0xff]
      %v2373 = vld [vmem:[%s2369 + $0x22] sm:$0xff]
      %v2374 = vld [vmem:[%s2369 + $0x32] sm:$0xff]
      %v2375 = vld [vmem:[%s2369 + $0x3a] sm:$0xff]
      %v2376 = vld [vmem:[%s2369 + $0x4a] sm:$0xff]
      %v2377 = vld [vmem:[%s2369 + $0x52] sm:$0xff]
      %v2378 = vld [vmem:[%s2369 + $0x62] sm:$0xff]
      %v2379 = vld [vmem:[%s2369 + $0x6a] sm:$0xff]
      %v2380 = vld [vmem:[%s2369 + $0x7a] sm:$0xff]
      %v2381 = vld [vmem:[%s2369 + $0x82] sm:$0xff]
      %v2382 = vld [vmem:[%s2369 + $0x92] sm:$0xff]
      %v2383 = vld [vmem:[%s2369 + $0x9a] sm:$0xff]
      %v2384 = vld [vmem:[%s2369 + $0xaa] sm:$0xff]
      %v2385 = vld [vmem:[%s2369 + $0xb2] sm:$0xff]
      %2386 = vst.msk [vmem:[%s372] sm:$0xff] %vm419, %v2370
      %2387 = vst.msk [vmem:[%s372 + $0x8] sm:$0xff] %vm419, %v2371
      %2388 = vst.msk [vmem:[%s372 + $0x10] sm:$0xff] %vm419, %v2372
      %2389 = vst.msk [vmem:[%s372 + $0x18] sm:$0xff] %vm419, %v2373
      %2390 = vst.msk [vmem:[%s372 + $0x20] sm:$0xff] %vm419, %v2374
      %2391 = vst.msk [vmem:[%s372 + $0x28] sm:$0xff] %vm419, %v2375
      %2392 = vst.msk [vmem:[%s372 + $0x30] sm:$0xff] %vm419, %v2376
      %2393 = vst.msk [vmem:[%s372 + $0x38] sm:$0xff] %vm419, %v2377
      %2394 = vst.msk [vmem:[%s372 + $0x40] sm:$0xff] %vm419, %v2378
      %2395 = vst.msk [vmem:[%s372 + $0x48] sm:$0xff] %vm419, %v2379
      %2396 = vst.msk [vmem:[%s372 + $0x50] sm:$0xff] %vm419, %v2380
      %2397 = vst.msk [vmem:[%s372 + $0x58] sm:$0xff] %vm419, %v2381
      %2398 = vst.msk [vmem:[%s372 + $0x60] sm:$0xff] %vm419, %v2382
      %2399 = vst.msk [vmem:[%s372 + $0x68] sm:$0xff] %vm419, %v2383
      %2400 = vst.msk [vmem:[%s372 + $0x70] sm:$0xff] %vm419, %v2384
      %2401 = vst.msk [vmem:[%s372 + $0x78] sm:$0xff] %vm419, %v2385
      %2418 = vrot.lane.b32.xlu0 %v2353, 4
      %v2419 = vpop.permute.xlu0 %2418
      %2420 = vrot.lane.b32.xlu0 %v2354, 4
      %v2421 = vpop.permute.xlu0 %2420
      %2422 = vrot.lane.b32.xlu0 %v2355, 4
      %v2423 = vpop.permute.xlu0 %2422
      %2424 = vrot.lane.b32.xlu0 %v2356, 4
      %v2425 = vpop.permute.xlu0 %2424
      %2426 = vrot.lane.b32.xlu0 %v2357, 4
      %v2427 = vpop.permute.xlu0 %2426
      %2428 = vrot.lane.b32.xlu0 %v2358, 4
      %v2429 = vpop.permute.xlu0 %2428
      %2430 = vrot.lane.b32.xlu0 %v2359, 4
      %v2431 = vpop.permute.xlu0 %2430
      %2432 = vrot.lane.b32.xlu0 %v2360, 4
      %v2433 = vpop.permute.xlu0 %2432
      %2434 = vrot.lane.b32.xlu0 %v2361, 4
      %v2435 = vpop.permute.xlu0 %2434
      %2436 = vrot.lane.b32.xlu0 %v2362, 4
      %v2437 = vpop.permute.xlu0 %2436
      %2438 = vrot.lane.b32.xlu0 %v2363, 4
      %v2439 = vpop.permute.xlu0 %2438
      %2440 = vrot.lane.b32.xlu0 %v2364, 4
      %v2441 = vpop.permute.xlu0 %2440
      %2442 = vrot.lane.b32.xlu0 %v2365, 4
      %v2443 = vpop.permute.xlu0 %2442
      %2444 = vrot.lane.b32.xlu0 %v2366, 4
      %v2445 = vpop.permute.xlu0 %2444
      %2446 = vrot.lane.b32.xlu0 %v2367, 4
      %v2447 = vpop.permute.xlu0 %2446
      %2448 = vrot.lane.b32.xlu0 %v2368, 4
      %v2449 = vpop.permute.xlu0 %2448
      %vm2466 = vcmask 64544
      %2467 = vst.msk [vmem:[%s372] sm:$0xff] %vm2466, %v2419
      %2468 = vst.msk [vmem:[%s372 + $0x8] sm:$0xff] %vm2466, %v2421
      %2469 = vst.msk [vmem:[%s372 + $0x10] sm:$0xff] %vm2466, %v2423
      %2470 = vst.msk [vmem:[%s372 + $0x18] sm:$0xff] %vm2466, %v2425
      %2471 = vst.msk [vmem:[%s372 + $0x20] sm:$0xff] %vm2466, %v2427
      %2472 = vst.msk [vmem:[%s372 + $0x28] sm:$0xff] %vm2466, %v2429
      %2473 = vst.msk [vmem:[%s372 + $0x30] sm:$0xff] %vm2466, %v2431
      %2474 = vst.msk [vmem:[%s372 + $0x38] sm:$0xff] %vm2466, %v2433
      %2475 = vst.msk [vmem:[%s372 + $0x40] sm:$0xff] %vm2466, %v2435
      %2476 = vst.msk [vmem:[%s372 + $0x48] sm:$0xff] %vm2466, %v2437
      %2477 = vst.msk [vmem:[%s372 + $0x50] sm:$0xff] %vm2466, %v2439
      %2478 = vst.msk [vmem:[%s372 + $0x58] sm:$0xff] %vm2466, %v2441
      %2479 = vst.msk [vmem:[%s372 + $0x60] sm:$0xff] %vm2466, %v2443
      %2480 = vst.msk [vmem:[%s372 + $0x68] sm:$0xff] %vm2466, %v2445
      %2481 = vst.msk [vmem:[%s372 + $0x70] sm:$0xff] %vm2466, %v2447
      %2482 = vst.msk [vmem:[%s372 + $0x78] sm:$0xff] %vm2466, %v2449
      %s2483 = smul.u32 8, %s22
      %p2484 = scmp.lt.s32.totalorder %s21, 1
      %s2485 = scalar_select %p2484, %s21, 1
      %p2486 = scmp.lt.s32.totalorder %s2483, 15
      %s2487 = scalar_select %p2486, %s2483, 15
      %s2488 = smul.addr %s2487, 2
      %s2489 = smul.addr %s2485, 32
      %s2490 = sadd.s32 %s2488, %s2489
      %s2491 = smul.addr %s2490, 8
      %s2492 = scalar_lea.vmem %s6, %s2491
      // Predicated region
      $region53: #{tpu_custom_call.1} parent=43 // pred_check
        %p2493 = pneg %p193
      $region54: #{tpu_custom_call.1} parent=43 // pred_check_branch
        %2495 = sbr.rel (%p2493) target = $region56
      $region55: #{tpu_custom_call.1} parent=43 // pred_region
        %s2496 = smul.u32 8, %s22
      $region56: #{tpu_custom_call.1} parent=43 // pred_fallthru
        _
    $region44: #{tpu_custom_call.1} parent=5 // pred_fallthru
      _
    %p2497 = scmp.le.s32.totalorder 2, %s12
    // Predicated region
    $region57: #{tpu_custom_call.1} parent=5 // pred_check
      %p2498 = pneg %p2497
    $region58: #{tpu_custom_call.1} parent=5 // pred_check_branch
      %2500 = sbr.rel (%p2498) target = $region60
    $region59: #{tpu_custom_call.1} parent=5 // pred_region
      %s2501 = ssub.s32 %s12, 2
      // Predicated region
      $region61: #{tpu_custom_call.1} parent=59 // pred_check
        %p2502 = pneg %p199
      $region62: #{tpu_custom_call.1} parent=59 // pred_check_branch
        %2504 = sbr.rel (%p2502) target = $region64
      $region63: #{tpu_custom_call.1} parent=59 // pred_region
        %s2505 = smul.u32 8, %s24
        %p2506 = scmp.lt.s32.totalorder %s23, 1
        %s2507 = scalar_select %p2506, %s23, 1
        %p2508 = scmp.lt.s32.totalorder %s2505, 15
        %s2509 = scalar_select %p2508, %s2505, 15
        %s2510 = smul.addr %s2509, 2
        %s2511 = smul.addr %s2507, 32
        %s2512 = sadd.s32 %s2510, %s2511
        %s2513 = smul.addr %s2512, 8
        %s2514 = scalar_lea.vmem %s6, %s2513
      $region64: #{tpu_custom_call.1} parent=59 // pred_fallthru
        _
    $region60: #{tpu_custom_call.1} parent=5 // pred_fallthru
      _
  $region6: #{tpu_custom_call.1} parent=0 // loop_footer
    %s16 = sadd.s32 1, %s12
  $region7: #{tpu_custom_call.1} parent=0 // loop_footer_branch
    %11 = sbr.rel target = $region3
  $region8: #{tpu_custom_call.1} parent=0 // loop_exit
    _

</llo_original>
